<compile_context>
chip_gen: v7x
topology: tpu7x:2x2x1
jax: 0.10.0
libtpu: 0.0.40
codegen_flags: <defaults>
</compile_context>

<pallas_src>
import jax
import jax.numpy as jnp
from jax import lax
from jax.experimental import pallas as pl
from jax.experimental.pallas import tpu as pltpu

LAMBDA_GP = 10.0
HIDDEN = 32
_EPS = 1e-6


# ----------------------------- Pallas kernels ------------------------------


def _disc_loss_kernel(xg_ref, xr_ref, w1t_ref, b1_ref, w2r_ref, scal_ref,
                      out_ref, gram_ref, csum_ref):
    """Accumulates d_loss = mean(D(x_gen)) - mean(D(x_real)) + lambda_gp * gp
    over batch tiles.

    scal_ref (SMEM, f32[3]) = [alpha, lambda_gp, 1/B].
    Scratch (persists across the batch grid):
      gram_ref : (H, H) f32 = W1^T W1
      csum_ref : (1, H) f32 = 2*eps * column sums of W1 (sum over F), pre-scaled
    """
    step = pl.program_id(0)

    alpha = scal_ref[0]
    lam = scal_ref[1]
    inv_b = scal_ref[2]

    w1t = w1t_ref[...]          # (H, F), lane-dense (F on the lane axis)
    b1 = b1_ref[...]            # (1, H) f32
    w2r = w2r_ref[...]          # (1, H) f32

    @pl.when(step == 0)
    def _init():
        # Zero the resident (1,1) accumulator and cache the W1 Gram matrix /
        # pre-scaled column sums used by the closed-form penalty row norms.
        out_ref[...] = jnp.zeros_like(out_ref)
        gram_ref[...] = lax.dot_general(
            w1t, w1t, (((1,), (1,)), ((), ())),
            preferred_element_type=jnp.float32)                          # (H, H)
        ones_row = jnp.ones((1, w1t.shape[1]), w1t.dtype)
        csum_ref[...] = (2.0 * _EPS) * lax.dot_general(
            ones_row, w1t, (((1,), (1,)), ((), ())),
            preferred_element_type=jnp.float32)                          # (1, H)

    xg = xg_ref[...]            # (TB, F)
    xr = xr_ref[...]            # (TB, F)
    f = xg.shape[1]

    # Critic pre-activations for x_gen and x_real (MXU, f32 accumulation).
    dims = (((1,), (1,)), ((), ()))                 # x . W1 (W1 stored transposed)
    pre_g = lax.dot_general(xg, w1t, dims,
                            preferred_element_type=jnp.float32) + b1     # (TB, H)
    pre_r = lax.dot_general(xr, w1t, dims,
                            preferred_element_type=jnp.float32) + b1     # (TB, H)

    # D(x_gen) - D(x_real) per row: the b2 bias cancels in the difference and
    # the H-contraction against w2 runs on the VPU/XLU (lane reduce) instead
    # of an N=1 MXU matmul.
    d_diff = jnp.sum((jnp.tanh(pre_g) - jnp.tanh(pre_r)) * w2r,
                     axis=1, keepdims=True)                              # (TB, 1)

    # Gradient penalty.  The pre-activation is linear in x, so the interpolate
    # pre-activation is the alpha-blend of the real/gen pre-activations:
    # no third (TB, F) matmul, no interpolate buffer.
    pre_i = alpha * pre_r + (1.0 - alpha) * pre_g                        # (TB, H)
    t = jnp.tanh(pre_i)
    g_h = (1.0 - t * t) * w2r                                            # (TB, H)
    # dD/dx = g_h @ W1^T is never materialized:
    #   ||g_h W1^T + eps||^2 = g_h G g_h^T + 2 eps (g_h . colsum(W1)) + F eps^2
    q = lax.dot_general(g_h, gram_ref[...], (((1,), (0,)), ((), ())),
                        preferred_element_type=jnp.float32)              # (TB, H)
    rowsq = jnp.sum(g_h * (q + csum_ref[...]),
                    axis=1, keepdims=True) + f * _EPS * _EPS             # (TB, 1)
    norms = jnp.sqrt(jnp.maximum(rowsq, 0.0))
    diff = norms - 1.0

    # Per-row critic difference + penalty fused into one (1,1) partial sum.
    out_ref[...] += inv_b * jnp.sum(d_diff + lam * (diff * diff),
                                    axis=0, keepdims=True)


def _gen_loss_kernel(xg_ref, w1t_ref, b1_ref, w2r_ref, scal_ref, out_ref):
    """Accumulates g_loss = -mean(D(x_gen)) over batch tiles.

    scal_ref (SMEM, f32[2]) = [b2, 1/B].
    """
    step = pl.program_id(0)
    b2 = scal_ref[0]
    inv_b = scal_ref[1]

    @pl.when(step == 0)
    def _init():
        out_ref[...] = jnp.zeros_like(out_ref)

    xg = xg_ref[...]
    pre = lax.dot_general(xg, w1t_ref[...], (((1,), (1,)), ((), ())),
                          preferred_element_type=jnp.float32) + b1_ref[...]
    d = jnp.sum(jnp.tanh(pre) * w2r_ref[...], axis=1, keepdims=True)     # (TB, 1)
    tile_rows = xg.shape[0]
    # b2 contribution folded in as a scalar (tile_rows * b2) instead of a
    # (TB,1) broadcast add.
    out_ref[...] += -inv_b * (jnp.sum(d, axis=0, keepdims=True) + tile_rows * b2)


# ------------------------------ JAX wrapper ---------------------------------


def _pick_batch_tile(b, f, x_itemsize, target_tile_bytes=2 << 20):
    """Largest (power-of-two * 8) divisor of b whose (tb, F) tile stays within
    a per-operand VMEM budget, so double-buffered gen+real tiles fit v7x's
    64 MiB VMEM with headroom."""
    if b % 8 != 0:
        return b                      # single full-batch block (grid of 1)
    cap = max(8, (target_tile_bytes // max(1, f * x_itemsize)) // 8 * 8)
    tb = 8
    while tb * 2 <= cap and b % (tb * 2) == 0:
        tb *= 2
    return tb


def _vmem_limit_bytes(tb, f, hh, x_itemsize):
    est = (2 * 2 * tb * f * x_itemsize       # xg + xr tiles, double buffered
           + 2 * hh * f * x_itemsize         # resident W1^T
           + 12 * tb * hh * 4                # pre/tanh/g_h/q intermediates (f32)
           + (hh * hh + 8 * hh) * 4          # gram + colsum scratch
           + (4 << 20))                      # headroom
    return int(min(64 << 20, max(32 << 20, 2 * est)))


def wgan_gp_loss(x_real, x_gen, params, alpha, lambda_gp=LAMBDA_GP, step=1,
                 batch_tile=None, use_bf16=False):
    """Pallas implementation of WGANGPLoss.forward with a built-in tanh critic.

    use_bf16: feed the (B, F) samples and W1 to the MXU in bfloat16 with f32
    accumulation (v6e/v7x fast path); reductions / penalty math stay f32.
    """
    w1, b1, w2r, b2 = params
    b = x_gen.shape[0]

    x_dtype = jnp.bfloat16 if use_bf16 else jnp.float32
    xg = x_gen.reshape(b, -1).astype(x_dtype)
    f = xg.shape[1]
    w1t = jnp.asarray(w1, jnp.float32).T.astype(x_dtype)       # (H, F) lane-dense
    hh = w1t.shape[0]
    b1 = jnp.asarray(b1, jnp.float32).reshape(1, hh)
    w2r = jnp.asarray(w2r, jnp.float32).reshape(1, hh)

    tb = batch_tile if batch_tile is not None else _pick_batch_tile(
        b, f, jnp.dtype(x_dtype).itemsize)
    if b % tb != 0:
        raise ValueError(f"batch {b} not divisible by batch_tile {tb}")
    grid = (b // tb,)

    x_spec = pl.BlockSpec((tb, f), lambda i: (i, 0))
    w1_spec = pl.BlockSpec((hh, f), lambda i: (0, 0))           # resident weights
    b1_spec = pl.BlockSpec((1, hh), lambda i: (0, 0))
    w2_spec = pl.BlockSpec((1, hh), lambda i: (0, 0))
    smem_spec = pl.BlockSpec(memory_space=pltpu.MemorySpace.SMEM)
    out_spec = pl.BlockSpec((1, 1), lambda i: (0, 0))           # resident accumulator
    out_shape = jax.ShapeDtypeStruct((1, 1), jnp.float32)

    compiler_params = pltpu.CompilerParams(
        dimension_semantics=("arbitrary",),                     # batch axis is a reduction
        vmem_limit_bytes=_vmem_limit_bytes(tb, f, hh, jnp.dtype(x_dtype).itemsize))
    # TODO(synk): shard the batch grid across v7x's two TensorCores (core_map + per-core partials).
    # TODO(synk): add an F grid axis (partial-sum pre/Gram accumulation) for very large C*H*W.

    if step == 1 or step == "discriminator":
        xr = x_real.reshape(b, -1).astype(x_dtype)              # x_real.to(x_gen)
        scal = jnp.stack([jnp.asarray(alpha, jnp.float32),
                          jnp.asarray(lambda_gp, jnp.float32),
                          jnp.asarray(1.0 / b, jnp.float32)])
        out = pl.pallas_call(
            _disc_loss_kernel,
            grid=grid,
            in_specs=[x_spec, x_spec, w1_spec, b1_spec, w2_spec, smem_spec],
            out_specs=out_spec,
            out_shape=out_shape,
            scratch_shapes=[pltpu.VMEM((hh, hh), jnp.float32),
                            pltpu.VMEM((1, hh), jnp.float32)],
            compiler_params=compiler_params,
        )(xg, xr, w1t, b1, w2r, scal)
        return out[0, 0]
    elif step == 0 or step == "generator":
        scal = jnp.stack([jnp.asarray(b2, jnp.float32),
                          jnp.asarray(1.0 / b, jnp.float32)])
        out = pl.pallas_call(
            _gen_loss_kernel,
            grid=grid,
            in_specs=[x_spec, w1_spec, b1_spec, w2_spec, smem_spec],
            out_specs=out_spec,
            out_shape=out_shape,
            compiler_params=compiler_params,
        )(xg, w1t, b1, w2r, scal)
        return out[0, 0]
    else:
        raise ValueError(f"unknown step {step}")


# --------------------------- pure-JAX reference ------------------------------


def _critic_ref(x, params):
    w1, b1, w2r, b2 = params
    h = jnp.tanh(x @ w1 + b1)
    return h @ w2r.T + b2    # (B, 1)


def _ref_disc_loss(x_real, x_gen, params, alpha, lam):
    b = x_real.shape[0]
    xr = x_real.reshape(b, -1)
    xg = x_gen.reshape(b, -1)
    interp = alpha * xr + (1.0 - alpha) * xg
    # grad_outputs = ones(B, 1)  <=>  gradient of sum(D) w.r.t. interpolate
    grads = jax.grad(lambda z: jnp.sum(_critic_ref(z, params)))(interp)   # (B, F)
    norms = jnp.linalg.norm(grads + 1e-6, axis=1)
    gp = jnp.mean((norms - 1.0) ** 2)
    return (jnp.mean(_critic_ref(xg, params))
            - jnp.mean(_critic_ref(xr, params))
            + lam * gp)


def _ref_gen_loss(x_gen, params):
    b = x_gen.shape[0]
    return -jnp.mean(_critic_ref(x_gen.reshape(b, -1), params))


# ---------------------------------- main -------------------------------------


if __name__ == "__main__":
    key = jax.random.PRNGKey(0)
    k1, k2, k3, k4, k5, ka = jax.random.split(key, 6)

    B, C, H, W = 16, 4, 16, 16
    F = C * H * W

    x_real = jax.random.normal(k1, (B, C, H, W), jnp.float32)
    x_gen = jax.random.normal(k2, (B, C, H, W), jnp.float32)

    # Deterministic critic parameters (synthetic, not loaded from checkpoint).
    w1 = 0.05 * jax.random.normal(k3, (F, HIDDEN), jnp.float32)     # (F, H)
    b1 = 0.05 * jax.random.normal(k5, (1, HIDDEN), jnp.float32)     # (1, H)
    w2r = 0.05 * jax.random.normal(k4, (1, HIDDEN), jnp.float32)    # W2 stored as (1, H)
    b2 = jnp.float32(0.1)
    params = (w1, b1, w2r, b2)

    # Deterministic stand-in for np.random.random() used for interpolation.
    alpha = jax.random.uniform(ka, (), jnp.float32)

    # f32 path; batch_tile=8 forces a 2-step grid and exercises the
    # resident-accumulator / scratch-Gram path.
    d_loss = wgan_gp_loss(x_real, x_gen, params, alpha, LAMBDA_GP,
                          step=1, batch_tile=8)
    g_loss = wgan_gp_loss(x_real, x_gen, params, alpha, LAMBDA_GP,
                          step=0, batch_tile=8)
    jax.block_until_ready((d_loss, g_loss))

    d_ref = _ref_disc_loss(x_real, x_gen, params, alpha, LAMBDA_GP)
    g_ref = _ref_gen_loss(x_gen, params)

    assert jnp.allclose(d_loss, d_ref, rtol=1e-3, atol=1e-3), (d_loss, d_ref)
    assert jnp.allclose(g_loss, g_ref, rtol=1e-3, atol=1e-3), (g_loss, g_ref)

    # Single-block path (grid of 1) via the automatic tile picker.
    d_loss1 = wgan_gp_loss(x_real, x_gen, params, alpha, LAMBDA_GP, step=1)
    jax.block_until_ready(d_loss1)
    assert jnp.allclose(d_loss1, d_ref, rtol=1e-3, atol=1e-3), (d_loss1, d_ref)

    # bf16 MXU fast path (v6e/v7x): f32 accumulation, looser numeric check.
    d_bf16 = wgan_gp_loss(x_real, x_gen, params, alpha, LAMBDA_GP,
                          step=1, batch_tile=8, use_bf16=True)
    jax.block_until_ready(d_bf16)
    assert jnp.isfinite(d_bf16), d_bf16
    assert jnp.allclose(d_bf16, d_ref, rtol=1e-1, atol=5e-1), (d_bf16, d_ref)

    print("KERNEL_OK")
</pallas_src>

<mosaic_0001>
module attributes {stable_mosaic.version = 11 : i64} {
  func.func @_disc_loss_kernel(%arg0: i32, %arg1: memref<8x1024xf32, #tpu.memory_space<vmem>>, %arg2: memref<8x1024xf32, #tpu.memory_space<vmem>>, %arg3: memref<32x1024xf32, #tpu.memory_space<vmem>>, %arg4: memref<1x32xf32, #tpu.memory_space<vmem>>, %arg5: memref<1x32xf32, #tpu.memory_space<vmem>>, %arg6: memref<3xf32, #tpu.memory_space<smem>>, %arg7: memref<1x1xf32, #tpu.memory_space<vmem>>, %arg8: memref<32x32xf32, #tpu.memory_space<vmem>>, %arg9: memref<1x32xf32, #tpu.memory_space<vmem>>) attributes {dimension_semantics = [#tpu.dimension_semantics<arbitrary>], iteration_bounds = array<i64: 2>, scalar_prefetch = 0 : i64, scratch_operands = 2 : i64, tpu.core_type = #tpu.core_type<tc>, window_params = [{transform_indices = @transform_0, window_bounds = array<i64: 8, 1024>}, {transform_indices = @transform_1, window_bounds = array<i64: 8, 1024>}, {pipeline_mode = #tpu.pipeline_mode<synchronous>, transform_indices = @transform_2, window_bounds = array<i64: 32, 1024>}, {pipeline_mode = #tpu.pipeline_mode<synchronous>, transform_indices = @transform_3, window_bounds = array<i64: 1, 32>}, {pipeline_mode = #tpu.pipeline_mode<synchronous>, transform_indices = @transform_4, window_bounds = array<i64: 1, 32>}, {transform_indices = @transform_5, window_bounds = array<i64: 3>}, {pipeline_mode = #tpu.pipeline_mode<synchronous>, transform_indices = @transform_6, window_bounds = array<i64: 1, 1>}]} {
    %c0 = arith.constant 0 : index
    %0 = memref.load %arg6[%c0] : memref<3xf32, #tpu.memory_space<smem>>
    %c1 = arith.constant 1 : index
    %1 = memref.load %arg6[%c1] : memref<3xf32, #tpu.memory_space<smem>>
    %c2 = arith.constant 2 : index
    %2 = memref.load %arg6[%c2] : memref<3xf32, #tpu.memory_space<smem>>
    %c0_0 = arith.constant 0 : index
    %c0_1 = arith.constant 0 : index
    %3 = vector.load %arg3[%c0_0, %c0_1] : memref<32x1024xf32, #tpu.memory_space<vmem>>, vector<32x1024xf32>
    %c0_2 = arith.constant 0 : index
    %c0_3 = arith.constant 0 : index
    %4 = vector.load %arg4[%c0_2, %c0_3] : memref<1x32xf32, #tpu.memory_space<vmem>>, vector<1x32xf32>
    %c0_4 = arith.constant 0 : index
    %c0_5 = arith.constant 0 : index
    %5 = vector.load %arg5[%c0_4, %c0_5] : memref<1x32xf32, #tpu.memory_space<vmem>>, vector<1x32xf32>
    %c0_i32 = arith.constant 0 : i32
    %6 = arith.cmpi eq, %arg0, %c0_i32 : i32
    %7 = arith.extui %6 : i1 to i32
    %c0_i32_6 = arith.constant 0 : i32
    %8 = arith.cmpi ne, %7, %c0_i32_6 : i32
    scf.if %8 {
      %cst_29 = arith.constant 0.000000e+00 : f32
      %62 = vector.broadcast %cst_29 : f32 to vector<1x1xf32>
      %c0_30 = arith.constant 0 : index
      %c0_31 = arith.constant 0 : index
      %63 = vector.load %arg7[%c0_30, %c0_31] : memref<1x1xf32, #tpu.memory_space<vmem>>, vector<1x1xf32>
      tpu.vector_store %arg7[%c0_30, %c0_31], %62 {strides = array<i32>} : memref<1x1xf32, #tpu.memory_space<vmem>>, vector<1x1xf32>,
      %cst_32 = arith.constant dense<0.000000e+00> : vector<32x32xf32>
      %64 = tpu.matmul %3, %3, %cst_32 {dimension_numbers = #tpu.dot_dimension_numbers<[1], [1], [0], [0], [0, 0, 1, 0], [], []>} : vector<32x1024xf32>, vector<32x1024xf32>, vector<32x32xf32> -> vector<32x32xf32>
      %c0_33 = arith.constant 0 : index
      %c0_34 = arith.constant 0 : index
      %65 = vector.load %arg8[%c0_33, %c0_34] : memref<32x32xf32, #tpu.memory_space<vmem>>, vector<32x32xf32>
      tpu.vector_store %arg8[%c0_33, %c0_34], %64 {strides = array<i32>} : memref<32x32xf32, #tpu.memory_space<vmem>>, vector<32x32xf32>,
      %cst_35 = arith.constant 1.000000e+00 : f32
      %66 = vector.broadcast %cst_35 : f32 to vector<1x1024xf32>
      %cst_36 = arith.constant dense<0.000000e+00> : vector<1x32xf32>
      %67 = tpu.matmul %66, %3, %cst_36 {dimension_numbers = #tpu.dot_dimension_numbers<[1], [1], [0], [0], [0, 0, 1, 0], [], []>} : vector<1x1024xf32>, vector<32x1024xf32>, vector<1x32xf32> -> vector<1x32xf32>
      %cst_37 = arith.constant 2.000000e-06 : f32
      %68 = vector.broadcast %cst_37 : f32 to vector<1x32xf32>
      %69 = arith.mulf %68, %67 : vector<1x32xf32>
      %c0_38 = arith.constant 0 : index
      %c0_39 = arith.constant 0 : index
      %70 = vector.load %arg9[%c0_38, %c0_39] : memref<1x32xf32, #tpu.memory_space<vmem>>, vector<1x32xf32>
      tpu.vector_store %arg9[%c0_38, %c0_39], %69 {strides = array<i32>} : memref<1x32xf32, #tpu.memory_space<vmem>>, vector<1x32xf32>,
    } else {
    }
    %c0_7 = arith.constant 0 : index
    %c0_8 = arith.constant 0 : index
    %9 = vector.load %arg1[%c0_7, %c0_8] : memref<8x1024xf32, #tpu.memory_space<vmem>>, vector<8x1024xf32>
    %c0_9 = arith.constant 0 : index
    %c0_10 = arith.constant 0 : index
    %10 = vector.load %arg2[%c0_9, %c0_10] : memref<8x1024xf32, #tpu.memory_space<vmem>>, vector<8x1024xf32>
    %cst = arith.constant dense<0.000000e+00> : vector<8x32xf32>
    %11 = tpu.matmul %9, %3, %cst {dimension_numbers = #tpu.dot_dimension_numbers<[1], [1], [0], [0], [0, 0, 1, 0], [], []>} : vector<8x1024xf32>, vector<32x1024xf32>, vector<8x32xf32> -> vector<8x32xf32>
    %12 = vector.broadcast %4 : vector<1x32xf32> to vector<8x32xf32>
    %13 = arith.addf %11, %12 : vector<8x32xf32>
    %cst_11 = arith.constant dense<0.000000e+00> : vector<8x32xf32>
    %14 = tpu.matmul %10, %3, %cst_11 {dimension_numbers = #tpu.dot_dimension_numbers<[1], [1], [0], [0], [0, 0, 1, 0], [], []>} : vector<8x1024xf32>, vector<32x1024xf32>, vector<8x32xf32> -> vector<8x32xf32>
    %15 = vector.broadcast %4 : vector<1x32xf32> to vector<8x32xf32>
    %16 = arith.addf %14, %15 : vector<8x32xf32>
    %17 = math.tanh %13 : vector<8x32xf32>
    %18 = math.tanh %16 : vector<8x32xf32>
    %19 = arith.subf %17, %18 : vector<8x32xf32>
    %20 = vector.broadcast %5 : vector<1x32xf32> to vector<8x32xf32>
    %21 = arith.mulf %19, %20 : vector<8x32xf32>
    %cst_12 = arith.constant dense<0.000000e+00> : vector<8xf32>
    %22 = vector.multi_reduction <add>, %21, %cst_12 [1] : vector<8x32xf32> to vector<8xf32>
    %23 = vector.shape_cast %22 : vector<8xf32> to vector<8x1xf32>
    %24 = vector.broadcast %0 : f32 to vector<8x32xf32>
    %25 = arith.mulf %24, %16 : vector<8x32xf32>
    %cst_13 = arith.constant 1.000000e+00 : f32
    %26 = arith.subf %cst_13, %0 : f32
    %27 = vector.broadcast %26 : f32 to vector<8x32xf32>
    %28 = arith.mulf %27, %13 : vector<8x32xf32>
    %29 = arith.addf %25, %28 : vector<8x32xf32>
    %30 = math.tanh %29 : vector<8x32xf32>
    %31 = arith.mulf %30, %30 : vector<8x32xf32>
    %cst_14 = arith.constant 1.000000e+00 : f32
    %32 = vector.broadcast %cst_14 : f32 to vector<8x32xf32>
    %33 = arith.subf %32, %31 : vector<8x32xf32>
    %34 = vector.broadcast %5 : vector<1x32xf32> to vector<8x32xf32>
    %35 = arith.mulf %33, %34 : vector<8x32xf32>
    %c0_15 = arith.constant 0 : index
    %c0_16 = arith.constant 0 : index
    %36 = vector.load %arg8[%c0_15, %c0_16] : memref<32x32xf32, #tpu.memory_space<vmem>>, vector<32x32xf32>
    %cst_17 = arith.constant dense<0.000000e+00> : vector<8x32xf32>
    %37 = tpu.matmul %35, %36, %cst_17 {dimension_numbers = #tpu.dot_dimension_numbers<[1], [0], [0], [1], [0, 0, 1, 1], [], []>} : vector<8x32xf32>, vector<32x32xf32>, vector<8x32xf32> -> vector<8x32xf32>
    %c0_18 = arith.constant 0 : index
    %c0_19 = arith.constant 0 : index
    %38 = vector.load %arg9[%c0_18, %c0_19] : memref<1x32xf32, #tpu.memory_space<vmem>>, vector<1x32xf32>
    %39 = vector.broadcast %38 : vector<1x32xf32> to vector<8x32xf32>
    %40 = arith.addf %37, %39 : vector<8x32xf32>
    %41 = arith.mulf %35, %40 : vector<8x32xf32>
    %cst_20 = arith.constant dense<0.000000e+00> : vector<8xf32>
    %42 = vector.multi_reduction <add>, %41, %cst_20 [1] : vector<8x32xf32> to vector<8xf32>
    %43 = vector.shape_cast %42 : vector<8xf32> to vector<8x1xf32>
    %cst_21 = arith.constant 1.024000e-09 : f32
    %44 = vector.broadcast %cst_21 : f32 to vector<8x1xf32>
    %45 = arith.addf %43, %44 : vector<8x1xf32>
    %cst_22 = arith.constant 0.000000e+00 : f32
    %46 = vector.broadcast %cst_22 : f32 to vector<8x1xf32>
    %47 = arith.maximumf %45, %46 : vector<8x1xf32>
    %48 = math.sqrt %47 : vector<8x1xf32>
    %cst_23 = arith.constant 1.000000e+00 : f32
    %49 = vector.broadcast %cst_23 : f32 to vector<8x1xf32>
    %50 = arith.subf %48, %49 : vector<8x1xf32>
    %c0_24 = arith.constant 0 : index
    %c0_25 = arith.constant 0 : index
    %51 = vector.load %arg7[%c0_24, %c0_25] : memref<1x1xf32, #tpu.memory_space<vmem>>, vector<1x1xf32>
    %52 = arith.mulf %50, %50 : vector<8x1xf32>
    %53 = vector.broadcast %1 : f32 to vector<8x1xf32>
    %54 = arith.mulf %53, %52 : vector<8x1xf32>
    %55 = arith.addf %23, %54 : vector<8x1xf32>
    %cst_26 = arith.constant dense<0.000000e+00> : vector<1xf32>
    %56 = vector.multi_reduction <add>, %55, %cst_26 [0] : vector<8x1xf32> to vector<1xf32>
    %57 = vector.shape_cast %56 : vector<1xf32> to vector<1x1xf32>
    %58 = vector.broadcast %2 : f32 to vector<1x1xf32>
    %59 = arith.mulf %58, %57 : vector<1x1xf32>
    %60 = arith.addf %51, %59 : vector<1x1xf32>
    %c0_27 = arith.constant 0 : index
    %c0_28 = arith.constant 0 : index
    %61 = vector.load %arg7[%c0_27, %c0_28] : memref<1x1xf32, #tpu.memory_space<vmem>>, vector<1x1xf32>
    tpu.vector_store %arg7[%c0_27, %c0_28], %60 {strides = array<i32>} : memref<1x1xf32, #tpu.memory_space<vmem>>, vector<1x1xf32>,
    return
  }
  func.func @transform_0(%arg0: i32) -> (i32, i32) {
    %c0_i32 = arith.constant 0 : i32
    %c0_i32_0 = arith.constant 0 : i32
    return %arg0, %c0_i32 : i32, i32
  }
  func.func @transform_1(%arg0: i32) -> (i32, i32) {
    %c0_i32 = arith.constant 0 : i32
    %c0_i32_0 = arith.constant 0 : i32
    return %arg0, %c0_i32 : i32, i32
  }
  func.func @transform_2(%arg0: i32) -> (i32, i32) {
    %c0_i32 = arith.constant 0 : i32
    %c0_i32_0 = arith.constant 0 : i32
    %c0_i32_1 = arith.constant 0 : i32
    return %c0_i32, %c0_i32_0 : i32, i32
  }
  func.func @transform_3(%arg0: i32) -> (i32, i32) {
    %c0_i32 = arith.constant 0 : i32
    %c0_i32_0 = arith.constant 0 : i32
    %c0_i32_1 = arith.constant 0 : i32
    return %c0_i32, %c0_i32_0 : i32, i32
  }
  func.func @transform_4(%arg0: i32) -> (i32, i32) {
    %c0_i32 = arith.constant 0 : i32
    %c0_i32_0 = arith.constant 0 : i32
    %c0_i32_1 = arith.constant 0 : i32
    return %c0_i32, %c0_i32_0 : i32, i32
  }
  func.func @transform_5(%arg0: i32) -> i32 {
    %c0_i32 = arith.constant 0 : i32
    %c0_i32_0 = arith.constant 0 : i32
    return %c0_i32 : i32
  }
  func.func @transform_6(%arg0: i32) -> (i32, i32) {
    %c0_i32 = arith.constant 0 : i32
    %c0_i32_0 = arith.constant 0 : i32
    %c0_i32_1 = arith.constant 0 : i32
    return %c0_i32, %c0_i32_0 : i32, i32
  }
}

</mosaic_0001>

<llo_original>
// kernel: tpu_custom_call.1
$region0: #{tpu_custom_call.1}
  #allocation0 [shape = 'u32[]', space=smem, size = 0x4, offset = 0x4, fixed_abs, tag = 'smem constant byte address 0x4 - core index']
  #allocation1 [shape = 'u32[144,128]{1,0:T(1,128)}', space=vmem, size = 0x12000, scoped, tag = 'internal scratch']
  #allocation2 [shape = 'f32[32,32]{1,0:T(8,128)}', space=vmem, size = 0x4000, scoped, tag = 'scratch operand']
  #allocation3 [shape = 'f32[1,32]{1,0:T(1,128)}', space=vmem, size = 0x200, scoped, tag = 'scratch operand']
  %s0 = inlined_call_operand.hbm [shape: f32[16,1024], index: 0, kind: input, shape index: {}]
  %s1 = inlined_call_operand.hbm [shape: f32[16,1024], index: 1, kind: input, shape index: {}]
  %s2 = inlined_call_operand.hbm [shape: f32[32,1024], index: 2, kind: input, shape index: {}]
  %s3 = inlined_call_operand.vmem [shape: f32[1,32], index: 3, kind: input, shape index: {}]
  %s4 = inlined_call_operand.vmem [shape: f32[1,32], index: 4, kind: input, shape index: {}]
  %s5 = inlined_call_operand.vmem [shape: f32[3], index: 5, kind: input, shape index: {}]
  %s6 = inlined_call_operand.hbm [shape: f32[1,1], index: 6, kind: output, shape index: {}]
  %s7 = sld [smem:[#allocation0]]
  $region77: #{tpu_custom_call.1} parent=0
    _
  %s9 = ssub.s32 1, %s7
  %s10 = scalar_select 0, %s9, %s7
  $region1: #{tpu_custom_call.1} parent=0
    #allocation4 [shape = 'u8[65536]{0}', space=vmem, size = 0x10000, scoped, tag = 'input window, operand 0']
    #allocation5 [shape = 's32[2]{0}', space=sflag, size = 0x8, scoped, tag = 'scoped memory for tpu_custom_call.1']
    #allocation6 [shape = 's32[2]{0}', space=sflag, size = 0x8, scoped, tag = 'scoped memory for tpu_custom_call.1']
    #allocation7 [shape = 's32[2]{0}', space=sflag, size = 0x8, scoped, tag = 'scoped memory for tpu_custom_call.1']
    #allocation8 [shape = 'u8[65536]{0}', space=vmem, size = 0x10000, scoped, tag = 'input window, operand 1']
    #allocation9 [shape = 's32[2]{0}', space=sflag, size = 0x8, scoped, tag = 'scoped memory for tpu_custom_call.1']
    #allocation10 [shape = 'u8[131072]{0}', space=vmem, size = 0x20000, scoped, tag = 'input window, operand 2, single buffered']
    #allocation11 [shape = 'u8[512]{0}', space=smem, size = 0x200, scoped, tag = 'input window, operand 5, single buffered']
    #allocation12 [shape = 'u8[512]{0}', space=vmem, size = 0x400, scoped, tag = 'output window, operand 0, single buffered']
    %11 = vsyncpa [#allocation5], 0
    %s12 = scalar_lea.sflag [#allocation5], 1
    %13 = vsyncpa %s12, 0
    %14 = vsyncpa [#allocation9], 0
    %s15 = scalar_lea.sflag [#allocation9], 1
    %16 = vsyncpa %s15, 0
    %17 = vsyncpa [#allocation7], 0
    %18 = vsyncpa [#allocation6], 0
    loop: start=0, step=1, limit=4
    $region2: #{tpu_custom_call.1} parent=1 // loop_pre_header
      _
    $region3: #{tpu_custom_call.1} parent=1 // loop_header
      %s20 = sphi 0, %s24
      %p21 = scmp.ge.s32.totalorder %s20, 4
      %s30 = sphi 0, %s32
      %s33 = sphi 0, %s30
      %s34 = sphi 0, %s33
      %s50 = sphi 0, %s34
      %s56 = sphi 0, %s58
      %s59 = sphi 0, %s56
      %s60 = sphi 0, %s59
      %s76 = sphi 0, %s60
      %s80 = sphi 0, %s80
      %s82 = sphi 0, %s80
      %s83 = sphi 0, %s82
      %s97 = sphi 0, %s83
      %s101 = sphi 0, %s101
      %s103 = sphi 0, %s101
      %s104 = sphi 0, %s103
      %s118 = sphi 0, %s104
      %s122 = sphi 0, %s122
      %s124 = sphi 0, %s122
      %s125 = sphi 0, %s124
      %s139 = sphi 0, %s125
      %s143 = sphi 0, %s143
      %s145 = sphi 0, %s143
      %s146 = sphi 0, %s145
      %s160 = sphi 0, %s146
      %s164 = sphi 0, %s164
      %s166 = sphi 0, %s164
      %s167 = sphi 0, %s166
      %s181 = sphi 0, %s167
    $region4: #{tpu_custom_call.1} parent=1 // loop_header_branch
      %23 = sbr.rel (%p21) target = $region8
    $region5: #{tpu_custom_call.1} parent=1 // loop_body
      %s25 = ssub.s32 %s20, 1
      %s26 = ssub.s32 %s20, 2
      %s27 = sadd.s32 %s20, 1
      %s28 = ssub.s32 %s20, %s27
      %p29 = scmp.eq.s32.totalorder %s28, 0
      %s31 = sadd.s32 %s30, 1
      %s32 = scalar_select %p29, %s30, %s31
      %p35 = pneg %p29
      %p36 = scmp.eq.s32.totalorder %s20, 1
      %p37 = por %p35, %p36
      %p38 = scmp.ne.s32.totalorder %s30, %s33
      %p39 = scmp.eq.s32.totalorder %s20, 0
      %p40 = por %p38, %p39
      %p41 = scmp.ne.s32.totalorder %s30, %s33
      %p42 = scmp.eq.s32.totalorder %s25, 1
      %p43 = por %p41, %p42
      %p44 = scmp.ne.s32.totalorder %s33, %s34
      %p45 = scmp.eq.s32.totalorder %s25, 0
      %p46 = por %p44, %p45
      %p47 = scmp.ne.s32.totalorder %s33, %s34
      %p48 = scmp.eq.s32.totalorder %s26, 1
      %p49 = por %p47, %p48
      %p51 = scmp.ne.s32.totalorder %s34, %s50
      %p52 = scmp.eq.s32.totalorder %s26, 0
      %p53 = por %p51, %p52
      %s54 = ssub.s32 %s20, %s27
      %p55 = scmp.eq.s32.totalorder %s54, 0
      %s57 = sadd.s32 %s56, 1
      %s58 = scalar_select %p55, %s56, %s57
      %p61 = pneg %p55
      %p62 = scmp.eq.s32.totalorder %s20, 1
      %p63 = por %p61, %p62
      %p64 = scmp.ne.s32.totalorder %s56, %s59
      %p65 = scmp.eq.s32.totalorder %s20, 0
      %p66 = por %p64, %p65
      %p67 = scmp.ne.s32.totalorder %s56, %s59
      %p68 = scmp.eq.s32.totalorder %s25, 1
      %p69 = por %p67, %p68
      %p70 = scmp.ne.s32.totalorder %s59, %s60
      %p71 = scmp.eq.s32.totalorder %s25, 0
      %p72 = por %p70, %p71
      %p73 = scmp.ne.s32.totalorder %s59, %s60
      %p74 = scmp.eq.s32.totalorder %s26, 1
      %p75 = por %p73, %p74
      %p77 = scmp.ne.s32.totalorder %s60, %s76
      %p78 = scmp.eq.s32.totalorder %s26, 0
      %p79 = por %p77, %p78
      %s81 = sadd.s32 %s80, 1
      %p84 = scmp.eq.s32.totalorder %s20, 1
      %p85 = scmp.ne.s32.totalorder %s80, %s82
      %p86 = scmp.eq.s32.totalorder %s20, 0
      %p87 = por %p85, %p86
      %p88 = scmp.ne.s32.totalorder %s80, %s82
      %p89 = scmp.eq.s32.totalorder %s25, 1
      %p90 = por %p88, %p89
      %p91 = scmp.ne.s32.totalorder %s82, %s83
      %p92 = scmp.eq.s32.totalorder %s25, 0
      %p93 = por %p91, %p92
      %p94 = scmp.ne.s32.totalorder %s82, %s83
      %p95 = scmp.eq.s32.totalorder %s26, 1
      %p96 = por %p94, %p95
      %p98 = scmp.ne.s32.totalorder %s83, %s97
      %p99 = scmp.eq.s32.totalorder %s26, 0
      %p100 = por %p98, %p99
      %s102 = sadd.s32 %s101, 1
      %p105 = scmp.eq.s32.totalorder %s20, 1
      %p106 = scmp.ne.s32.totalorder %s101, %s103
      %p107 = scmp.eq.s32.totalorder %s20, 0
      %p108 = por %p106, %p107
      %p109 = scmp.ne.s32.totalorder %s101, %s103
      %p110 = scmp.eq.s32.totalorder %s25, 1
      %p111 = por %p109, %p110
      %p112 = scmp.ne.s32.totalorder %s103, %s104
      %p113 = scmp.eq.s32.totalorder %s25, 0
      %p114 = por %p112, %p113
      %p115 = scmp.ne.s32.totalorder %s103, %s104
      %p116 = scmp.eq.s32.totalorder %s26, 1
      %p117 = por %p115, %p116
      %p119 = scmp.ne.s32.totalorder %s104, %s118
      %p120 = scmp.eq.s32.totalorder %s26, 0
      %p121 = por %p119, %p120
      %s123 = sadd.s32 %s122, 1
      %p126 = scmp.eq.s32.totalorder %s20, 1
      %p127 = scmp.ne.s32.totalorder %s122, %s124
      %p128 = scmp.eq.s32.totalorder %s20, 0
      %p129 = por %p127, %p128
      %p130 = scmp.ne.s32.totalorder %s122, %s124
      %p131 = scmp.eq.s32.totalorder %s25, 1
      %p132 = por %p130, %p131
      %p133 = scmp.ne.s32.totalorder %s124, %s125
      %p134 = scmp.eq.s32.totalorder %s25, 0
      %p135 = por %p133, %p134
      %p136 = scmp.ne.s32.totalorder %s124, %s125
      %p137 = scmp.eq.s32.totalorder %s26, 1
      %p138 = por %p136, %p137
      %p140 = scmp.ne.s32.totalorder %s125, %s139
      %p141 = scmp.eq.s32.totalorder %s26, 0
      %p142 = por %p140, %p141
      %s144 = sadd.s32 %s143, 1
      %p147 = scmp.eq.s32.totalorder %s20, 1
      %p148 = scmp.ne.s32.totalorder %s143, %s145
      %p149 = scmp.eq.s32.totalorder %s20, 0
      %p150 = por %p148, %p149
      %p151 = scmp.ne.s32.totalorder %s143, %s145
      %p152 = scmp.eq.s32.totalorder %s25, 1
      %p153 = por %p151, %p152
      %p154 = scmp.ne.s32.totalorder %s145, %s146
      %p155 = scmp.eq.s32.totalorder %s25, 0
      %p156 = por %p154, %p155
      %p157 = scmp.ne.s32.totalorder %s145, %s146
      %p158 = scmp.eq.s32.totalorder %s26, 1
      %p159 = por %p157, %p158
      %p161 = scmp.ne.s32.totalorder %s146, %s160
      %p162 = scmp.eq.s32.totalorder %s26, 0
      %p163 = por %p161, %p162
      %s165 = sadd.s32 %s164, 1
      %p168 = scmp.eq.s32.totalorder %s20, 1
      %p169 = scmp.ne.s32.totalorder %s164, %s166
      %p170 = scmp.eq.s32.totalorder %s20, 0
      %p171 = por %p169, %p170
      %p172 = scmp.ne.s32.totalorder %s164, %s166
      %p173 = scmp.eq.s32.totalorder %s25, 1
      %p174 = por %p172, %p173
      %p175 = scmp.ne.s32.totalorder %s166, %s167
      %p176 = scmp.eq.s32.totalorder %s25, 0
      %p177 = por %p175, %p176
      %p178 = scmp.ne.s32.totalorder %s166, %s167
      %p179 = scmp.eq.s32.totalorder %s26, 1
      %p180 = por %p178, %p179
      %p182 = scmp.ne.s32.totalorder %s167, %s181
      %p183 = scmp.eq.s32.totalorder %s26, 0
      %p184 = por %p182, %p183
      %p185 = scmp.le.s32.totalorder 1, %s20
      %p186 = scmp.lt.s32.totalorder %s20, 3
      %p187 = pnand %p185, %p186
      %p188 = pneg %p187
      // Predicated region
      $region9: #{tpu_custom_call.1} parent=5 // pred_check
        _
      $region10: #{tpu_custom_call.1} parent=5 // pred_check_branch
        %190 = sbr.rel (%p187) target = $region12
      $region11: #{tpu_custom_call.1} parent=5 // pred_region
        %s191 = ssub.s32 %s20, 1
        // Predicated region
        $region13: #{tpu_custom_call.1} parent=11 // pred_check
          %p192 = pneg %p93
        $region14: #{tpu_custom_call.1} parent=11 // pred_check_branch
          %194 = sbr.rel (%p192) target = $region16
        $region15: #{tpu_custom_call.1} parent=11 // pred_region
          %s196 = ssub.s32 4096, 4096
          %197 = vsyncadd [#allocation9], %s196
          %s198 = sshll.u32 [#allocation10], 4
          %s199 = int_to_ptr.vmem [resolvable:$true] %s198
          %204 = dma.hbm_to_vmem [thread:$0]  %s2, 4096, %s199, [#allocation9], 1024, 1024, 64
        $region16: #{tpu_custom_call.1} parent=11 // pred_fallthru
          _
        // Predicated region
        $region17: #{tpu_custom_call.1} parent=11 // pred_check
          %p205 = pneg %p114
        $region18: #{tpu_custom_call.1} parent=11 // pred_check_branch
          %207 = sbr.rel (%p205) target = $region20
        $region19: #{tpu_custom_call.1} parent=11 // pred_region
          _
        $region20: #{tpu_custom_call.1} parent=11 // pred_fallthru
          _
        // Predicated region
        $region21: #{tpu_custom_call.1} parent=11 // pred_check
          %p208 = pneg %p135
        $region22: #{tpu_custom_call.1} parent=11 // pred_check_branch
          %210 = sbr.rel (%p208) target = $region24
        $region23: #{tpu_custom_call.1} parent=11 // pred_region
          _
        $region24: #{tpu_custom_call.1} parent=11 // pred_fallthru
          _
        // Predicated region
        $region25: #{tpu_custom_call.1} parent=11 // pred_check
          %p211 = pneg %p156
        $region26: #{tpu_custom_call.1} parent=11 // pred_check_branch
          %213 = sbr.rel (%p211) target = $region28
        $region27: #{tpu_custom_call.1} parent=11 // pred_region
          %s215 = ssub.s32 16, 16
          %216 = vsyncadd [#allocation7], %s215
          %s218 = sshll.u32 %s5, 4
          %s219 = int_to_ptr.vmem [resolvable:$true] %s218
          %221 = dma.vmem_to_smem %s219, 16, [#allocation11], [#allocation7]
        $region28: #{tpu_custom_call.1} parent=11 // pred_fallthru
          _
      $region12: #{tpu_custom_call.1} parent=5 // pred_fallthru
        _
      %p222 = scmp.lt.s32.totalorder %s20, 2
      // Predicated region
      $region29: #{tpu_custom_call.1} parent=5 // pred_check
        %p223 = pneg %p222
      $region30: #{tpu_custom_call.1} parent=5 // pred_check_branch
        %225 = sbr.rel (%p223) target = $region32
      $region31: #{tpu_custom_call.1} parent=5 // pred_region
        // Predicated region
        $region33: #{tpu_custom_call.1} parent=31 // pred_check
          %p226 = pneg %p40
        $region34: #{tpu_custom_call.1} parent=31 // pred_check_branch
          %228 = sbr.rel (%p226) target = $region36
        $region35: #{tpu_custom_call.1} parent=31 // pred_region
          %s229 = sand.u32 %s30, 1
          %s230 = scalar_lea.sflag [#allocation5], %s229
          %s231 = sand.u32 %s30, 1
          %s232 = smul.addr %s231, 64
          %s233 = scalar_lea.vmem [#allocation4], %s232
          %s235 = ssub.s32 1024, 1024
          %236 = vsyncadd %s230, %s235
          %s237 = smul.addr %s20, 8
          %s238 = smul.addr %s237, 128
          %s239 = scalar_lea.hbm %s0, %s238
          %s241 = sshll.u32 %s233, 4
          %s242 = int_to_ptr.vmem [resolvable:$true] %s241
          %244 = dma.hbm_to_vmem [thread:$0]  %s239, 1024, %s242, %s230
        $region36: #{tpu_custom_call.1} parent=31 // pred_fallthru
          _
        // Predicated region
        $region37: #{tpu_custom_call.1} parent=31 // pred_check
          %p245 = pneg %p66
        $region38: #{tpu_custom_call.1} parent=31 // pred_check_branch
          %247 = sbr.rel (%p245) target = $region40
        $region39: #{tpu_custom_call.1} parent=31 // pred_region
          %s248 = sand.u32 %s20, 1
          %s249 = scalar_lea.sflag [#allocation9], %s248
          %s250 = sand.u32 %s56, 1
          %s251 = smul.addr %s250, 64
          %s252 = scalar_lea.vmem [#allocation8], %s251
          %s254 = ssub.s32 1024, 1024
          %255 = vsyncadd %s249, %s254
          %s256 = smul.addr %s20, 8
          %s257 = smul.addr %s256, 128
          %s258 = scalar_lea.hbm %s1, %s257
          %s260 = sshll.u32 %s252, 4
          %s261 = int_to_ptr.vmem [resolvable:$true] %s260
          %263 = dma.hbm_to_vmem [thread:$0]  %s258, 1024, %s261, %s249
        $region40: #{tpu_custom_call.1} parent=31 // pred_fallthru
          _
      $region32: #{tpu_custom_call.1} parent=5 // pred_fallthru
        _
      %p264 = scmp.le.s32.totalorder 1, %s20
      %p265 = scmp.lt.s32.totalorder %s20, 3
      %p266 = pnand %p264, %p265
      %p267 = pneg %p266
      // Predicated region
      $region41: #{tpu_custom_call.1} parent=5 // pred_check
        _
      $region42: #{tpu_custom_call.1} parent=5 // pred_check_branch
        %269 = sbr.rel (%p266) target = $region44
      $region43: #{tpu_custom_call.1} parent=5 // pred_region
        %s270 = ssub.s32 %s20, 1
        %s271 = sand.u32 %s33, 1
        %s272 = scalar_lea.sflag [#allocation5], %s271
        %s273 = sand.u32 %s33, 1
        %s274 = smul.addr %s273, 64
        %s275 = scalar_lea.vmem [#allocation4], %s274
        // Predicated region
        $region45: #{tpu_custom_call.1} parent=43 // pred_check
          %p276 = pneg %p46
        $region46: #{tpu_custom_call.1} parent=43 // pred_check_branch
          %278 = sbr.rel (%p276) target = $region48
        $region47: #{tpu_custom_call.1} parent=43 // pred_region
          %279 = dma.done %s272, 1024
        $region48: #{tpu_custom_call.1} parent=43 // pred_fallthru
          _
        %s280 = sand.u32 %s25, 1
        %s281 = scalar_lea.sflag [#allocation9], %s280
        %s282 = sand.u32 %s59, 1
        %s283 = smul.addr %s282, 64
        %s284 = scalar_lea.vmem [#allocation8], %s283
        // Predicated region
        $region49: #{tpu_custom_call.1} parent=43 // pred_check
          %p285 = pneg %p72
        $region50: #{tpu_custom_call.1} parent=43 // pred_check_branch
          %287 = sbr.rel (%p285) target = $region52
        $region51: #{tpu_custom_call.1} parent=43 // pred_region
          %288 = dma.done %s281, 1024
        $region52: #{tpu_custom_call.1} parent=43 // pred_fallthru
          _
        // Predicated region
        $region53: #{tpu_custom_call.1} parent=43 // pred_check
          %p289 = pneg %p93
        $region54: #{tpu_custom_call.1} parent=43 // pred_check_branch
          %291 = sbr.rel (%p289) target = $region56
        $region55: #{tpu_custom_call.1} parent=43 // pred_region
          %292 = dma.done [#allocation9], 4096
        $region56: #{tpu_custom_call.1} parent=43 // pred_fallthru
          _
        // Predicated region
        $region57: #{tpu_custom_call.1} parent=43 // pred_check
          %p293 = pneg %p156
        $region58: #{tpu_custom_call.1} parent=43 // pred_check_branch
          %295 = sbr.rel (%p293) target = $region60
        $region59: #{tpu_custom_call.1} parent=43 // pred_region
          %296 = dma.done [#allocation7], 16
        $region60: #{tpu_custom_call.1} parent=43 // pred_fallthru
          _
        %297 = sfence
        %s298 = sand.u32 %s33, 1
        %s299 = scalar_lea.sflag [#allocation5], %s298
        %s300 = sand.u32 %s33, 1
        %s301 = smul.addr %s300, 64
        %s302 = scalar_lea.vmem [#allocation4], %s301
        %p303 = pneg %p46
        %p304 = pneg %p43
        %s305 = sand.u32 %s25, 1
        %s306 = scalar_lea.sflag [#allocation9], %s305
        %s307 = sand.u32 %s59, 1
        %s308 = smul.addr %s307, 64
        %s309 = scalar_lea.vmem [#allocation8], %s308
        %p310 = pneg %p72
        %p311 = pneg %p69
        %p312 = pneg %p93
        %p313 = pneg %p90
        %p314 = pneg %p114
        %p315 = pneg %p111
        %p316 = pneg %p135
        %p317 = pneg %p132
        %p318 = pneg %p156
        %p319 = pneg %p153
        %p320 = pneg %p177
        %p321 = pneg %p174
        %s322 = sld [smem:[#allocation11]]
        %s323 = sld [smem:[#allocation11 + $0x1]]
        %s324 = sld [smem:[#allocation11 + $0x2]]
        %v325 = vld [vmem:[#allocation10] sm:$0xff]
        %v326 = vld [vmem:[#allocation10 + $0x8] sm:$0xff]
        %v327 = vld [vmem:[#allocation10 + $0x10] sm:$0xff]
        %v328 = vld [vmem:[#allocation10 + $0x18] sm:$0xff]
        %v329 = vld [vmem:[#allocation10 + $0x20] sm:$0xff]
        %v330 = vld [vmem:[#allocation10 + $0x28] sm:$0xff]
        %v331 = vld [vmem:[#allocation10 + $0x30] sm:$0xff]
        %v332 = vld [vmem:[#allocation10 + $0x38] sm:$0xff]
        %v333 = vld [vmem:[#allocation10 + $0x40] sm:$0xff]
        %v334 = vld [vmem:[#allocation10 + $0x48] sm:$0xff]
        %v335 = vld [vmem:[#allocation10 + $0x50] sm:$0xff]
        %v336 = vld [vmem:[#allocation10 + $0x58] sm:$0xff]
        %v337 = vld [vmem:[#allocation10 + $0x60] sm:$0xff]
        %v338 = vld [vmem:[#allocation10 + $0x68] sm:$0xff]
        %v339 = vld [vmem:[#allocation10 + $0x70] sm:$0xff]
        %v340 = vld [vmem:[#allocation10 + $0x78] sm:$0xff]
        %v341 = vld [vmem:[#allocation10 + $0x80] sm:$0xff]
        %v342 = vld [vmem:[#allocation10 + $0x88] sm:$0xff]
        %v343 = vld [vmem:[#allocation10 + $0x90] sm:$0xff]
        %v344 = vld [vmem:[#allocation10 + $0x98] sm:$0xff]
        %v345 = vld [vmem:[#allocation10 + $0xa0] sm:$0xff]
        %v346 = vld [vmem:[#allocation10 + $0xa8] sm:$0xff]
        %v347 = vld [vmem:[#allocation10 + $0xb0] sm:$0xff]
        %v348 = vld [vmem:[#allocation10 + $0xb8] sm:$0xff]
        %v349 = vld [vmem:[#allocation10 + $0xc0] sm:$0xff]
        %v350 = vld [vmem:[#allocation10 + $0xc8] sm:$0xff]
        %v351 = vld [vmem:[#allocation10 + $0xd0] sm:$0xff]
        %v352 = vld [vmem:[#allocation10 + $0xd8] sm:$0xff]
        %v353 = vld [vmem:[#allocation10 + $0xe0] sm:$0xff]
        %v354 = vld [vmem:[#allocation10 + $0xe8] sm:$0xff]
        %v355 = vld [vmem:[#allocation10 + $0xf0] sm:$0xff]
        %v356 = vld [vmem:[#allocation10 + $0xf8] sm:$0xff]
        %v357 = vld [vmem:[%s3] sm:$0x1]
        %v358 = vld [vmem:[%s4] sm:$0x1]
        %p359 = scmp.eq.s32.totalorder %s25, 0
        // Predicated region
        $region61: #{tpu_custom_call.1} parent=43 // pred_check
          %p360 = pneg %p359
        $region62: #{tpu_custom_call.1} parent=43 // pred_check_branch
          %362 = sbr.rel (%p360) target = $region64
        $region63: #{tpu_custom_call.1} parent=43 // pred_region
          %vm363 = vcmask 0
          %364 = vst.msk [vmem:[#allocation12] sm:$0x1] %vm363, 0.0
          %365 = vmatprep.subr.mxu0 %v326
          %366 = vmatpush1.xpose.msra.mxu0 %v325
          %367 = vmatprep.subr.mxu0 %v334
          %368 = vmatpush1.xpose.msra.mxu0 %v333
          %369 = vmatprep.subr.mxu0 %v342
          %370 = vmatpush1.xpose.msra.mxu0 %v341
          %371 = vmatprep.subr.mxu0 %v350
          %372 = vmatpush1.xpose.msra.mxu0 %v349
          %373 = vmatprep.subr.mxu0 0.0
          %374 = vmatpush1.xpose.msra.mxu0 0.0
          %375 = vmatprep.subr.mxu0 0.0
          %376 = vmatpush1.xpose.msra.mxu0 0.0
          %377 = vmatprep.subr.mxu0 0.0
          %378 = vmatpush1.xpose.msra.mxu0 0.0
          %379 = vmatprep.subr.mxu0 0.0
          %380 = vmatpush1.xpose.msra.mxu0 0.0
          %381 = vmatprep.subr.mxu0 0.0
          %382 = vmatpush1.xpose.msra.mxu0 0.0
          %383 = vmatprep.subr.mxu0 0.0
          %384 = vmatpush1.xpose.msra.mxu0 0.0
          %385 = vmatprep.subr.mxu0 0.0
          %386 = vmatpush1.xpose.msra.mxu0 0.0
          %387 = vmatprep.subr.mxu0 0.0
          %388 = vmatpush1.xpose.msra.mxu0 0.0
          %389 = vmatprep.subr.mxu0 0.0
          %390 = vmatpush1.xpose.msra.mxu0 0.0
          %391 = vmatprep.subr.mxu0 0.0
          %392 = vmatpush1.xpose.msra.mxu0 0.0
          %393 = vmatprep.subr.mxu0 0.0
          %394 = vmatpush1.xpose.msra.mxu0 0.0
          %395 = vmatprep.subr.mxu0 0.0
          %396 = vmatpush1.xpose.msra.mxu0 0.0
          %397 = vmatprep.subr.mxu0 0.0
          %398 = vmatpush1.xpose.msra.mxu0 0.0
          %399 = vmatprep.subr.mxu0 0.0
          %400 = vmatpush1.xpose.msra.mxu0 0.0
          %401 = vmatprep.subr.mxu0 0.0
          %402 = vmatpush1.xpose.msra.mxu0 0.0
          %403 = vmatprep.subr.mxu0 0.0
          %404 = vmatpush1.xpose.msra.mxu0 0.0
          %405 = vmatprep.subr.mxu0 0.0
          %406 = vmatpush1.xpose.msra.mxu0 0.0
          %407 = vmatprep.subr.mxu0 0.0
          %408 = vmatpush1.xpose.msra.mxu0 0.0
          %409 = vmatprep.subr.mxu0 0.0
          %410 = vmatpush1.xpose.msra.mxu0 0.0
          %411 = vmatprep.subr.mxu0 0.0
          %412 = vmatpush1.xpose.msra.mxu0 0.0
          %413 = vmatprep.subr.mxu0 0.0
          %414 = vmatpush1.xpose.msra.mxu0 0.0
          %415 = vmatprep.subr.mxu0 0.0
          %416 = vmatpush1.xpose.msra.mxu0 0.0
          %417 = vmatprep.subr.mxu0 0.0
          %418 = vmatpush1.xpose.msra.mxu0 0.0
          %419 = vmatprep.subr.mxu0 0.0
          %420 = vmatpush1.xpose.msra.mxu0 0.0
          %421 = vmatprep.subr.mxu0 0.0
          %422 = vmatpush1.xpose.msra.mxu0 0.0
          %423 = vmatprep.subr.mxu0 0.0
          %424 = vmatpush1.xpose.msra.mxu0 0.0
          %425 = vmatprep.subr.mxu0 0.0
          %426 = vmatpush1.xpose.msra.mxu0 0.0
          %427 = vmatprep.subr.mxu0 0.0
          %428 = vmatpush1.xpose.msra.mxu0 0.0
          %429 = vmatprep.mubr.f32.mxu0 %v326
          %430 = vmatmul.mubr.f32.gmra.mrb[0].mxu0 %v325
          %v431 = vpop.f32.mrb[0].mxu0
          %v432 = vadd.f32 0.0, %v431
          %v433 = vpop.f32.mrb[0].mxu0
          %434 = vmatprep.mubr.f32.mxu0 %v334
          %435 = vmatmul.mubr.f32.gmra.mrb[0].mxu0 %v333
          %v436 = vpop.f32.mrb[0].mxu0
          %v437 = vadd.f32 0.0, %v436
          %v438 = vpop.f32.mrb[0].mxu0
          %439 = vmatprep.mubr.f32.mxu0 %v342
          %440 = vmatmul.mubr.f32.gmra.mrb[0].mxu0 %v341
          %v441 = vpop.f32.mrb[0].mxu0
          %v442 = vadd.f32 0.0, %v441
          %v443 = vpop.f32.mrb[0].mxu0
          %444 = vmatprep.mubr.f32.mxu0 %v350
          %445 = vmatmul.mubr.f32.gmra.mrb[0].mxu0 %v349
          %v446 = vpop.f32.mrb[0].mxu0
          %v447 = vadd.f32 0.0, %v446
          %v448 = vpop.f32.mrb[0].mxu0
          %449 = vdwg.mxu0
          %450 = vmatprep.subr.mxu0 %v328
          %451 = vmatpush1.xpose.msra.mxu0 %v327
          %452 = vmatprep.subr.mxu0 %v336
          %453 = vmatpush1.xpose.msra.mxu0 %v335
          %454 = vmatprep.subr.mxu0 %v344
          %455 = vmatpush1.xpose.msra.mxu0 %v343
          %456 = vmatprep.subr.mxu0 %v352
          %457 = vmatpush1.xpose.msra.mxu0 %v351
          %458 = vmatprep.subr.mxu0 0.0
          %459 = vmatpush1.xpose.msra.mxu0 0.0
          %460 = vmatprep.subr.mxu0 0.0
          %461 = vmatpush1.xpose.msra.mxu0 0.0
          %462 = vmatprep.subr.mxu0 0.0
          %463 = vmatpush1.xpose.msra.mxu0 0.0
          %464 = vmatprep.subr.mxu0 0.0
          %465 = vmatpush1.xpose.msra.mxu0 0.0
          %466 = vmatprep.subr.mxu0 0.0
          %467 = vmatpush1.xpose.msra.mxu0 0.0
          %468 = vmatprep.subr.mxu0 0.0
          %469 = vmatpush1.xpose.msra.mxu0 0.0
          %470 = vmatprep.subr.mxu0 0.0
          %471 = vmatpush1.xpose.msra.mxu0 0.0
          %472 = vmatprep.subr.mxu0 0.0
          %473 = vmatpush1.xpose.msra.mxu0 0.0
          %474 = vmatprep.subr.mxu0 0.0
          %475 = vmatpush1.xpose.msra.mxu0 0.0
          %476 = vmatprep.subr.mxu0 0.0
          %477 = vmatpush1.xpose.msra.mxu0 0.0
          %478 = vmatprep.subr.mxu0 0.0
          %479 = vmatpush1.xpose.msra.mxu0 0.0
          %480 = vmatprep.subr.mxu0 0.0
          %481 = vmatpush1.xpose.msra.mxu0 0.0
          %482 = vmatprep.subr.mxu0 0.0
          %483 = vmatpush1.xpose.msra.mxu0 0.0
          %484 = vmatprep.subr.mxu0 0.0
          %485 = vmatpush1.xpose.msra.mxu0 0.0
          %486 = vmatprep.subr.mxu0 0.0
          %487 = vmatpush1.xpose.msra.mxu0 0.0
          %488 = vmatprep.subr.mxu0 0.0
          %489 = vmatpush1.xpose.msra.mxu0 0.0
          %490 = vmatprep.subr.mxu0 0.0
          %491 = vmatpush1.xpose.msra.mxu0 0.0
          %492 = vmatprep.subr.mxu0 0.0
          %493 = vmatpush1.xpose.msra.mxu0 0.0
          %494 = vmatprep.subr.mxu0 0.0
          %495 = vmatpush1.xpose.msra.mxu0 0.0
          %496 = vmatprep.subr.mxu0 0.0
          %497 = vmatpush1.xpose.msra.mxu0 0.0
          %498 = vmatprep.subr.mxu0 0.0
          %499 = vmatpush1.xpose.msra.mxu0 0.0
          %500 = vmatprep.subr.mxu0 0.0
          %501 = vmatpush1.xpose.msra.mxu0 0.0
          %502 = vmatprep.subr.mxu0 0.0
          %503 = vmatpush1.xpose.msra.mxu0 0.0
          %504 = vmatprep.subr.mxu0 0.0
          %505 = vmatpush1.xpose.msra.mxu0 0.0
          %506 = vmatprep.subr.mxu0 0.0
          %507 = vmatpush1.xpose.msra.mxu0 0.0
          %508 = vmatprep.subr.mxu0 0.0
          %509 = vmatpush1.xpose.msra.mxu0 0.0
          %510 = vmatprep.subr.mxu0 0.0
          %511 = vmatpush1.xpose.msra.mxu0 0.0
          %512 = vmatprep.subr.mxu0 0.0
          %513 = vmatpush1.xpose.msra.mxu0 0.0
          %514 = vmatprep.mubr.f32.mxu0 %v328
          %515 = vmatmul.mubr.f32.gmra.mrb[0].mxu0 %v327
          %v516 = vpop.f32.mrb[0].mxu0
          %v517 = vadd.f32 %v432, %v516
          %v518 = vpop.f32.mrb[0].mxu0
          %519 = vmatprep.mubr.f32.mxu0 %v336
          %520 = vmatmul.mubr.f32.gmra.mrb[0].mxu0 %v335
          %v521 = vpop.f32.mrb[0].mxu0
          %v522 = vadd.f32 %v437, %v521
          %v523 = vpop.f32.mrb[0].mxu0
          %524 = vmatprep.mubr.f32.mxu0 %v344
          %525 = vmatmul.mubr.f32.gmra.mrb[0].mxu0 %v343
          %v526 = vpop.f32.mrb[0].mxu0
          %v527 = vadd.f32 %v442, %v526
          %v528 = vpop.f32.mrb[0].mxu0
          %529 = vmatprep.mubr.f32.mxu0 %v352
          %530 = vmatmul.mubr.f32.gmra.mrb[0].mxu0 %v351
          %v531 = vpop.f32.mrb[0].mxu0
          %v532 = vadd.f32 %v447, %v531
          %v533 = vpop.f32.mrb[0].mxu0
          %534 = vdwg.mxu0
          %535 = vmatprep.subr.mxu0 %v330
          %536 = vmatpush1.xpose.msra.mxu0 %v329
          %537 = vmatprep.subr.mxu0 %v338
          %538 = vmatpush1.xpose.msra.mxu0 %v337
          %539 = vmatprep.subr.mxu0 %v346
          %540 = vmatpush1.xpose.msra.mxu0 %v345
          %541 = vmatprep.subr.mxu0 %v354
          %542 = vmatpush1.xpose.msra.mxu0 %v353
          %543 = vmatprep.subr.mxu0 0.0
          %544 = vmatpush1.xpose.msra.mxu0 0.0
          %545 = vmatprep.subr.mxu0 0.0
          %546 = vmatpush1.xpose.msra.mxu0 0.0
          %547 = vmatprep.subr.mxu0 0.0
          %548 = vmatpush1.xpose.msra.mxu0 0.0
          %549 = vmatprep.subr.mxu0 0.0
          %550 = vmatpush1.xpose.msra.mxu0 0.0
          %551 = vmatprep.subr.mxu0 0.0
          %552 = vmatpush1.xpose.msra.mxu0 0.0
          %553 = vmatprep.subr.mxu0 0.0
          %554 = vmatpush1.xpose.msra.mxu0 0.0
          %555 = vmatprep.subr.mxu0 0.0
          %556 = vmatpush1.xpose.msra.mxu0 0.0
          %557 = vmatprep.subr.mxu0 0.0
          %558 = vmatpush1.xpose.msra.mxu0 0.0
          %559 = vmatprep.subr.mxu0 0.0
          %560 = vmatpush1.xpose.msra.mxu0 0.0
          %561 = vmatprep.subr.mxu0 0.0
          %562 = vmatpush1.xpose.msra.mxu0 0.0
          %563 = vmatprep.subr.mxu0 0.0
          %564 = vmatpush1.xpose.msra.mxu0 0.0
          %565 = vmatprep.subr.mxu0 0.0
          %566 = vmatpush1.xpose.msra.mxu0 0.0
          %567 = vmatprep.subr.mxu0 0.0
          %568 = vmatpush1.xpose.msra.mxu0 0.0
          %569 = vmatprep.subr.mxu0 0.0
          %570 = vmatpush1.xpose.msra.mxu0 0.0
          %571 = vmatprep.subr.mxu0 0.0
          %572 = vmatpush1.xpose.msra.mxu0 0.0
          %573 = vmatprep.subr.mxu0 0.0
          %574 = vmatpush1.xpose.msra.mxu0 0.0
          %575 = vmatprep.subr.mxu0 0.0
          %576 = vmatpush1.xpose.msra.mxu0 0.0
          %577 = vmatprep.subr.mxu0 0.0
          %578 = vmatpush1.xpose.msra.mxu0 0.0
          %579 = vmatprep.subr.mxu0 0.0
          %580 = vmatpush1.xpose.msra.mxu0 0.0
          %581 = vmatprep.subr.mxu0 0.0
          %582 = vmatpush1.xpose.msra.mxu0 0.0
          %583 = vmatprep.subr.mxu0 0.0
          %584 = vmatpush1.xpose.msra.mxu0 0.0
          %585 = vmatprep.subr.mxu0 0.0
          %586 = vmatpush1.xpose.msra.mxu0 0.0
          %587 = vmatprep.subr.mxu0 0.0
          %588 = vmatpush1.xpose.msra.mxu0 0.0
          %589 = vmatprep.subr.mxu0 0.0
          %590 = vmatpush1.xpose.msra.mxu0 0.0
          %591 = vmatprep.subr.mxu0 0.0
          %592 = vmatpush1.xpose.msra.mxu0 0.0
          %593 = vmatprep.subr.mxu0 0.0
          %594 = vmatpush1.xpose.msra.mxu0 0.0
          %595 = vmatprep.subr.mxu0 0.0
          %596 = vmatpush1.xpose.msra.mxu0 0.0
          %597 = vmatprep.subr.mxu0 0.0
          %598 = vmatpush1.xpose.msra.mxu0 0.0
          %599 = vmatprep.mubr.f32.mxu0 %v330
          %600 = vmatmul.mubr.f32.gmra.mrb[0].mxu0 %v329
          %v601 = vpop.f32.mrb[0].mxu0
          %v602 = vadd.f32 %v517, %v601
          %v603 = vpop.f32.mrb[0].mxu0
          %604 = vmatprep.mubr.f32.mxu0 %v338
          %605 = vmatmul.mubr.f32.gmra.mrb[0].mxu0 %v337
          %v606 = vpop.f32.mrb[0].mxu0
          %v607 = vadd.f32 %v522, %v606
          %v608 = vpop.f32.mrb[0].mxu0
          %609 = vmatprep.mubr.f32.mxu0 %v346
          %610 = vmatmul.mubr.f32.gmra.mrb[0].mxu0 %v345
          %v611 = vpop.f32.mrb[0].mxu0
          %v612 = vadd.f32 %v527, %v611
          %v613 = vpop.f32.mrb[0].mxu0
          %614 = vmatprep.mubr.f32.mxu0 %v354
          %615 = vmatmul.mubr.f32.gmra.mrb[0].mxu0 %v353
          %v616 = vpop.f32.mrb[0].mxu0
          %v617 = vadd.f32 %v532, %v616
          %v618 = vpop.f32.mrb[0].mxu0
          %619 = vdwg.mxu0
          %620 = vmatprep.subr.mxu0 %v332
          %621 = vmatpush1.xpose.msra.mxu0 %v331
          %622 = vmatprep.subr.mxu0 %v340
          %623 = vmatpush1.xpose.msra.mxu0 %v339
          %624 = vmatprep.subr.mxu0 %v348
          %625 = vmatpush1.xpose.msra.mxu0 %v347
          %626 = vmatprep.subr.mxu0 %v356
          %627 = vmatpush1.xpose.msra.mxu0 %v355
          %628 = vmatprep.subr.mxu0 0.0
          %629 = vmatpush1.xpose.msra.mxu0 0.0
          %630 = vmatprep.subr.mxu0 0.0
          %631 = vmatpush1.xpose.msra.mxu0 0.0
          %632 = vmatprep.subr.mxu0 0.0
          %633 = vmatpush1.xpose.msra.mxu0 0.0
          %634 = vmatprep.subr.mxu0 0.0
          %635 = vmatpush1.xpose.msra.mxu0 0.0
          %636 = vmatprep.subr.mxu0 0.0
          %637 = vmatpush1.xpose.msra.mxu0 0.0
          %638 = vmatprep.subr.mxu0 0.0
          %639 = vmatpush1.xpose.msra.mxu0 0.0
          %640 = vmatprep.subr.mxu0 0.0
          %641 = vmatpush1.xpose.msra.mxu0 0.0
          %642 = vmatprep.subr.mxu0 0.0
          %643 = vmatpush1.xpose.msra.mxu0 0.0
          %644 = vmatprep.subr.mxu0 0.0
          %645 = vmatpush1.xpose.msra.mxu0 0.0
          %646 = vmatprep.subr.mxu0 0.0
          %647 = vmatpush1.xpose.msra.mxu0 0.0
          %648 = vmatprep.subr.mxu0 0.0
          %649 = vmatpush1.xpose.msra.mxu0 0.0
          %650 = vmatprep.subr.mxu0 0.0
          %651 = vmatpush1.xpose.msra.mxu0 0.0
          %652 = vmatprep.subr.mxu0 0.0
          %653 = vmatpush1.xpose.msra.mxu0 0.0
          %654 = vmatprep.subr.mxu0 0.0
          %655 = vmatpush1.xpose.msra.mxu0 0.0
          %656 = vmatprep.subr.mxu0 0.0
          %657 = vmatpush1.xpose.msra.mxu0 0.0
          %658 = vmatprep.subr.mxu0 0.0
          %659 = vmatpush1.xpose.msra.mxu0 0.0
          %660 = vmatprep.subr.mxu0 0.0
          %661 = vmatpush1.xpose.msra.mxu0 0.0
          %662 = vmatprep.subr.mxu0 0.0
          %663 = vmatpush1.xpose.msra.mxu0 0.0
          %664 = vmatprep.subr.mxu0 0.0
          %665 = vmatpush1.xpose.msra.mxu0 0.0
          %666 = vmatprep.subr.mxu0 0.0
          %667 = vmatpush1.xpose.msra.mxu0 0.0
          %668 = vmatprep.subr.mxu0 0.0
          %669 = vmatpush1.xpose.msra.mxu0 0.0
          %670 = vmatprep.subr.mxu0 0.0
          %671 = vmatpush1.xpose.msra.mxu0 0.0
          %672 = vmatprep.subr.mxu0 0.0
          %673 = vmatpush1.xpose.msra.mxu0 0.0
          %674 = vmatprep.subr.mxu0 0.0
          %675 = vmatpush1.xpose.msra.mxu0 0.0
          %676 = vmatprep.subr.mxu0 0.0
          %677 = vmatpush1.xpose.msra.mxu0 0.0
          %678 = vmatprep.subr.mxu0 0.0
          %679 = vmatpush1.xpose.msra.mxu0 0.0
          %680 = vmatprep.subr.mxu0 0.0
          %681 = vmatpush1.xpose.msra.mxu0 0.0
          %682 = vmatprep.subr.mxu0 0.0
          %683 = vmatpush1.xpose.msra.mxu0 0.0
          %684 = vmatprep.mubr.f32.mxu0 %v332
          %685 = vmatmul.mubr.f32.gmra.mrb[0].mxu0 %v331
          %v686 = vpop.f32.mrb[0].mxu0
          %v687 = vadd.f32 %v602, %v686
          %v688 = vpop.f32.mrb[0].mxu0
          %689 = vmatprep.mubr.f32.mxu0 %v340
          %690 = vmatmul.mubr.f32.gmra.mrb[0].mxu0 %v339
          %v691 = vpop.f32.mrb[0].mxu0
          %v692 = vadd.f32 %v607, %v691
          %v693 = vpop.f32.mrb[0].mxu0
          %694 = vmatprep.mubr.f32.mxu0 %v348
          %695 = vmatmul.mubr.f32.gmra.mrb[0].mxu0 %v347
          %v696 = vpop.f32.mrb[0].mxu0
          %v697 = vadd.f32 %v612, %v696
          %v698 = vpop.f32.mrb[0].mxu0
          %699 = vmatprep.mubr.f32.mxu0 %v356
          %700 = vmatmul.mubr.f32.gmra.mrb[0].mxu0 %v355
          %v701 = vpop.f32.mrb[0].mxu0
          %v702 = vadd.f32 %v617, %v701
          %v703 = vpop.f32.mrb[0].mxu0
          %704 = vdwg.mxu0
          %vm705 = vcmask 261120
          %706 = vst.msk [vmem:[#allocation2] sm:$0xff] %vm705, %v687
          %707 = vst.msk [vmem:[#allocation2 + $0x8] sm:$0xff] %vm705, %v692
          %708 = vst.msk [vmem:[#allocation2 + $0x10] sm:$0xff] %vm705, %v697
          %709 = vst.msk [vmem:[#allocation2 + $0x18] sm:$0xff] %vm705, %v702
          %710 = vmatprep.subr.mxu0 %v326
          %711 = vmatpush1.xpose.msra.mxu0 %v325
          %712 = vmatprep.subr.mxu0 %v334
          %713 = vmatpush1.xpose.msra.mxu0 %v333
          %714 = vmatprep.subr.mxu0 %v342
          %715 = vmatpush1.xpose.msra.mxu0 %v341
          %716 = vmatprep.subr.mxu0 %v350
          %717 = vmatpush1.xpose.msra.mxu0 %v349
          %718 = vmatprep.subr.mxu0 0.0
          %719 = vmatpush1.xpose.msra.mxu0 0.0
          %720 = vmatprep.subr.mxu0 0.0
          %721 = vmatpush1.xpose.msra.mxu0 0.0
          %722 = vmatprep.subr.mxu0 0.0
          %723 = vmatpush1.xpose.msra.mxu0 0.0
          %724 = vmatprep.subr.mxu0 0.0
          %725 = vmatpush1.xpose.msra.mxu0 0.0
          %726 = vmatprep.subr.mxu0 0.0
          %727 = vmatpush1.xpose.msra.mxu0 0.0
          %728 = vmatprep.subr.mxu0 0.0
          %729 = vmatpush1.xpose.msra.mxu0 0.0
          %730 = vmatprep.subr.mxu0 0.0
          %731 = vmatpush1.xpose.msra.mxu0 0.0
          %732 = vmatprep.subr.mxu0 0.0
          %733 = vmatpush1.xpose.msra.mxu0 0.0
          %734 = vmatprep.subr.mxu0 0.0
          %735 = vmatpush1.xpose.msra.mxu0 0.0
          %736 = vmatprep.subr.mxu0 0.0
          %737 = vmatpush1.xpose.msra.mxu0 0.0
          %738 = vmatprep.subr.mxu0 0.0
          %739 = vmatpush1.xpose.msra.mxu0 0.0
          %740 = vmatprep.subr.mxu0 0.0
          %741 = vmatpush1.xpose.msra.mxu0 0.0
          %742 = vmatprep.subr.mxu0 0.0
          %743 = vmatpush1.xpose.msra.mxu0 0.0
          %744 = vmatprep.subr.mxu0 0.0
          %745 = vmatpush1.xpose.msra.mxu0 0.0
          %746 = vmatprep.subr.mxu0 0.0
          %747 = vmatpush1.xpose.msra.mxu0 0.0
          %748 = vmatprep.subr.mxu0 0.0
          %749 = vmatpush1.xpose.msra.mxu0 0.0
          %750 = vmatprep.subr.mxu0 0.0
          %751 = vmatpush1.xpose.msra.mxu0 0.0
          %752 = vmatprep.subr.mxu0 0.0
          %753 = vmatpush1.xpose.msra.mxu0 0.0
          %754 = vmatprep.subr.mxu0 0.0
          %755 = vmatpush1.xpose.msra.mxu0 0.0
          %756 = vmatprep.subr.mxu0 0.0
          %757 = vmatpush1.xpose.msra.mxu0 0.0
          %758 = vmatprep.subr.mxu0 0.0
          %759 = vmatpush1.xpose.msra.mxu0 0.0
          %760 = vmatprep.subr.mxu0 0.0
          %761 = vmatpush1.xpose.msra.mxu0 0.0
          %762 = vmatprep.subr.mxu0 0.0
          %763 = vmatpush1.xpose.msra.mxu0 0.0
          %764 = vmatprep.subr.mxu0 0.0
          %765 = vmatpush1.xpose.msra.mxu0 0.0
          %766 = vmatprep.subr.mxu0 0.0
          %767 = vmatpush1.xpose.msra.mxu0 0.0
          %768 = vmatprep.subr.mxu0 0.0
          %769 = vmatpush1.xpose.msra.mxu0 0.0
          %770 = vmatprep.subr.mxu0 0.0
          %771 = vmatpush1.xpose.msra.mxu0 0.0
          %772 = vmatprep.subr.mxu0 0.0
          %773 = vmatpush1.xpose.msra.mxu0 0.0
          %774 = vmatprep.mubr.f32.mxu0 1.0
          %775 = vmatmul.mubr.f32.gmra.mrb[0].mxu0 1.0
          %v776 = vpop.f32.mrb[0].mxu0
          %v777 = vadd.f32 0.0, %v776
          %v778 = vpop.f32.mrb[0].mxu0
          %779 = vdwg.mxu0
          %780 = vmatprep.subr.mxu0 %v328
          %781 = vmatpush1.xpose.msra.mxu0 %v327
          %782 = vmatprep.subr.mxu0 %v336
          %783 = vmatpush1.xpose.msra.mxu0 %v335
          %784 = vmatprep.subr.mxu0 %v344
          %785 = vmatpush1.xpose.msra.mxu0 %v343
          %786 = vmatprep.subr.mxu0 %v352
          %787 = vmatpush1.xpose.msra.mxu0 %v351
          %788 = vmatprep.subr.mxu0 0.0
          %789 = vmatpush1.xpose.msra.mxu0 0.0
          %790 = vmatprep.subr.mxu0 0.0
          %791 = vmatpush1.xpose.msra.mxu0 0.0
          %792 = vmatprep.subr.mxu0 0.0
          %793 = vmatpush1.xpose.msra.mxu0 0.0
          %794 = vmatprep.subr.mxu0 0.0
          %795 = vmatpush1.xpose.msra.mxu0 0.0
          %796 = vmatprep.subr.mxu0 0.0
          %797 = vmatpush1.xpose.msra.mxu0 0.0
          %798 = vmatprep.subr.mxu0 0.0
          %799 = vmatpush1.xpose.msra.mxu0 0.0
          %800 = vmatprep.subr.mxu0 0.0
          %801 = vmatpush1.xpose.msra.mxu0 0.0
          %802 = vmatprep.subr.mxu0 0.0
          %803 = vmatpush1.xpose.msra.mxu0 0.0
          %804 = vmatprep.subr.mxu0 0.0
          %805 = vmatpush1.xpose.msra.mxu0 0.0
          %806 = vmatprep.subr.mxu0 0.0
          %807 = vmatpush1.xpose.msra.mxu0 0.0
          %808 = vmatprep.subr.mxu0 0.0
          %809 = vmatpush1.xpose.msra.mxu0 0.0
          %810 = vmatprep.subr.mxu0 0.0
          %811 = vmatpush1.xpose.msra.mxu0 0.0
          %812 = vmatprep.subr.mxu0 0.0
          %813 = vmatpush1.xpose.msra.mxu0 0.0
          %814 = vmatprep.subr.mxu0 0.0
          %815 = vmatpush1.xpose.msra.mxu0 0.0
          %816 = vmatprep.subr.mxu0 0.0
          %817 = vmatpush1.xpose.msra.mxu0 0.0
          %818 = vmatprep.subr.mxu0 0.0
          %819 = vmatpush1.xpose.msra.mxu0 0.0
          %820 = vmatprep.subr.mxu0 0.0
          %821 = vmatpush1.xpose.msra.mxu0 0.0
          %822 = vmatprep.subr.mxu0 0.0
          %823 = vmatpush1.xpose.msra.mxu0 0.0
          %824 = vmatprep.subr.mxu0 0.0
          %825 = vmatpush1.xpose.msra.mxu0 0.0
          %826 = vmatprep.subr.mxu0 0.0
          %827 = vmatpush1.xpose.msra.mxu0 0.0
          %828 = vmatprep.subr.mxu0 0.0
          %829 = vmatpush1.xpose.msra.mxu0 0.0
          %830 = vmatprep.subr.mxu0 0.0
          %831 = vmatpush1.xpose.msra.mxu0 0.0
          %832 = vmatprep.subr.mxu0 0.0
          %833 = vmatpush1.xpose.msra.mxu0 0.0
          %834 = vmatprep.subr.mxu0 0.0
          %835 = vmatpush1.xpose.msra.mxu0 0.0
          %836 = vmatprep.subr.mxu0 0.0
          %837 = vmatpush1.xpose.msra.mxu0 0.0
          %838 = vmatprep.subr.mxu0 0.0
          %839 = vmatpush1.xpose.msra.mxu0 0.0
          %840 = vmatprep.subr.mxu0 0.0
          %841 = vmatpush1.xpose.msra.mxu0 0.0
          %842 = vmatprep.subr.mxu0 0.0
          %843 = vmatpush1.xpose.msra.mxu0 0.0
          %844 = vmatprep.mubr.f32.mxu0 1.0
          %845 = vmatmul.mubr.f32.gmra.mrb[0].mxu0 1.0
          %v846 = vpop.f32.mrb[0].mxu0
          %v847 = vadd.f32 %v777, %v846
          %v848 = vpop.f32.mrb[0].mxu0
          %849 = vdwg.mxu0
          %850 = vmatprep.subr.mxu0 %v330
          %851 = vmatpush1.xpose.msra.mxu0 %v329
          %852 = vmatprep.subr.mxu0 %v338
          %853 = vmatpush1.xpose.msra.mxu0 %v337
          %854 = vmatprep.subr.mxu0 %v346
          %855 = vmatpush1.xpose.msra.mxu0 %v345
          %856 = vmatprep.subr.mxu0 %v354
          %857 = vmatpush1.xpose.msra.mxu0 %v353
          %858 = vmatprep.subr.mxu0 0.0
          %859 = vmatpush1.xpose.msra.mxu0 0.0
          %860 = vmatprep.subr.mxu0 0.0
          %861 = vmatpush1.xpose.msra.mxu0 0.0
          %862 = vmatprep.subr.mxu0 0.0
          %863 = vmatpush1.xpose.msra.mxu0 0.0
          %864 = vmatprep.subr.mxu0 0.0
          %865 = vmatpush1.xpose.msra.mxu0 0.0
          %866 = vmatprep.subr.mxu0 0.0
          %867 = vmatpush1.xpose.msra.mxu0 0.0
          %868 = vmatprep.subr.mxu0 0.0
          %869 = vmatpush1.xpose.msra.mxu0 0.0
          %870 = vmatprep.subr.mxu0 0.0
          %871 = vmatpush1.xpose.msra.mxu0 0.0
          %872 = vmatprep.subr.mxu0 0.0
          %873 = vmatpush1.xpose.msra.mxu0 0.0
          %874 = vmatprep.subr.mxu0 0.0
          %875 = vmatpush1.xpose.msra.mxu0 0.0
          %876 = vmatprep.subr.mxu0 0.0
          %877 = vmatpush1.xpose.msra.mxu0 0.0
          %878 = vmatprep.subr.mxu0 0.0
          %879 = vmatpush1.xpose.msra.mxu0 0.0
          %880 = vmatprep.subr.mxu0 0.0
          %881 = vmatpush1.xpose.msra.mxu0 0.0
          %882 = vmatprep.subr.mxu0 0.0
          %883 = vmatpush1.xpose.msra.mxu0 0.0
          %884 = vmatprep.subr.mxu0 0.0
          %885 = vmatpush1.xpose.msra.mxu0 0.0
          %886 = vmatprep.subr.mxu0 0.0
          %887 = vmatpush1.xpose.msra.mxu0 0.0
          %888 = vmatprep.subr.mxu0 0.0
          %889 = vmatpush1.xpose.msra.mxu0 0.0
          %890 = vmatprep.subr.mxu0 0.0
          %891 = vmatpush1.xpose.msra.mxu0 0.0
          %892 = vmatprep.subr.mxu0 0.0
          %893 = vmatpush1.xpose.msra.mxu0 0.0
          %894 = vmatprep.subr.mxu0 0.0
          %895 = vmatpush1.xpose.msra.mxu0 0.0
          %896 = vmatprep.subr.mxu0 0.0
          %897 = vmatpush1.xpose.msra.mxu0 0.0
          %898 = vmatprep.subr.mxu0 0.0
          %899 = vmatpush1.xpose.msra.mxu0 0.0
          %900 = vmatprep.subr.mxu0 0.0
          %901 = vmatpush1.xpose.msra.mxu0 0.0
          %902 = vmatprep.subr.mxu0 0.0
          %903 = vmatpush1.xpose.msra.mxu0 0.0
          %904 = vmatprep.subr.mxu0 0.0
          %905 = vmatpush1.xpose.msra.mxu0 0.0
          %906 = vmatprep.subr.mxu0 0.0
          %907 = vmatpush1.xpose.msra.mxu0 0.0
          %908 = vmatprep.subr.mxu0 0.0
          %909 = vmatpush1.xpose.msra.mxu0 0.0
          %910 = vmatprep.subr.mxu0 0.0
          %911 = vmatpush1.xpose.msra.mxu0 0.0
          %912 = vmatprep.subr.mxu0 0.0
          %913 = vmatpush1.xpose.msra.mxu0 0.0
          %914 = vmatprep.mubr.f32.mxu0 1.0
          %915 = vmatmul.mubr.f32.gmra.mrb[0].mxu0 1.0
          %v916 = vpop.f32.mrb[0].mxu0
          %v917 = vadd.f32 %v847, %v916
          %v918 = vpop.f32.mrb[0].mxu0
          %919 = vdwg.mxu0
          %920 = vmatprep.subr.mxu0 %v332
          %921 = vmatpush1.xpose.msra.mxu0 %v331
          %922 = vmatprep.subr.mxu0 %v340
          %923 = vmatpush1.xpose.msra.mxu0 %v339
          %924 = vmatprep.subr.mxu0 %v348
          %925 = vmatpush1.xpose.msra.mxu0 %v347
          %926 = vmatprep.subr.mxu0 %v356
          %927 = vmatpush1.xpose.msra.mxu0 %v355
          %928 = vmatprep.subr.mxu0 0.0
          %929 = vmatpush1.xpose.msra.mxu0 0.0
          %930 = vmatprep.subr.mxu0 0.0
          %931 = vmatpush1.xpose.msra.mxu0 0.0
          %932 = vmatprep.subr.mxu0 0.0
          %933 = vmatpush1.xpose.msra.mxu0 0.0
          %934 = vmatprep.subr.mxu0 0.0
          %935 = vmatpush1.xpose.msra.mxu0 0.0
          %936 = vmatprep.subr.mxu0 0.0
          %937 = vmatpush1.xpose.msra.mxu0 0.0
          %938 = vmatprep.subr.mxu0 0.0
          %939 = vmatpush1.xpose.msra.mxu0 0.0
          %940 = vmatprep.subr.mxu0 0.0
          %941 = vmatpush1.xpose.msra.mxu0 0.0
          %942 = vmatprep.subr.mxu0 0.0
          %943 = vmatpush1.xpose.msra.mxu0 0.0
          %944 = vmatprep.subr.mxu0 0.0
          %945 = vmatpush1.xpose.msra.mxu0 0.0
          %946 = vmatprep.subr.mxu0 0.0
          %947 = vmatpush1.xpose.msra.mxu0 0.0
          %948 = vmatprep.subr.mxu0 0.0
          %949 = vmatpush1.xpose.msra.mxu0 0.0
          %950 = vmatprep.subr.mxu0 0.0
          %951 = vmatpush1.xpose.msra.mxu0 0.0
          %952 = vmatprep.subr.mxu0 0.0
          %953 = vmatpush1.xpose.msra.mxu0 0.0
          %954 = vmatprep.subr.mxu0 0.0
          %955 = vmatpush1.xpose.msra.mxu0 0.0
          %956 = vmatprep.subr.mxu0 0.0
          %957 = vmatpush1.xpose.msra.mxu0 0.0
          %958 = vmatprep.subr.mxu0 0.0
          %959 = vmatpush1.xpose.msra.mxu0 0.0
          %960 = vmatprep.subr.mxu0 0.0
          %961 = vmatpush1.xpose.msra.mxu0 0.0
          %962 = vmatprep.subr.mxu0 0.0
          %963 = vmatpush1.xpose.msra.mxu0 0.0
          %964 = vmatprep.subr.mxu0 0.0
          %965 = vmatpush1.xpose.msra.mxu0 0.0
          %966 = vmatprep.subr.mxu0 0.0
          %967 = vmatpush1.xpose.msra.mxu0 0.0
          %968 = vmatprep.subr.mxu0 0.0
          %969 = vmatpush1.xpose.msra.mxu0 0.0
          %970 = vmatprep.subr.mxu0 0.0
          %971 = vmatpush1.xpose.msra.mxu0 0.0
          %972 = vmatprep.subr.mxu0 0.0
          %973 = vmatpush1.xpose.msra.mxu0 0.0
          %974 = vmatprep.subr.mxu0 0.0
          %975 = vmatpush1.xpose.msra.mxu0 0.0
          %976 = vmatprep.subr.mxu0 0.0
          %977 = vmatpush1.xpose.msra.mxu0 0.0
          %978 = vmatprep.subr.mxu0 0.0
          %979 = vmatpush1.xpose.msra.mxu0 0.0
          %980 = vmatprep.subr.mxu0 0.0
          %981 = vmatpush1.xpose.msra.mxu0 0.0
          %982 = vmatprep.subr.mxu0 0.0
          %983 = vmatpush1.xpose.msra.mxu0 0.0
          %984 = vmatprep.mubr.f32.mxu0 1.0
          %985 = vmatmul.mubr.f32.gmra.mrb[0].mxu0 1.0
          %v986 = vpop.f32.mrb[0].mxu0
          %v987 = vadd.f32 %v917, %v986
          %v988 = vpop.f32.mrb[0].mxu0
          %989 = vdwg.mxu0
          %v990 = vmul.f32 %v987, 2e-06
          %vm991 = vcmask 253952
          %992 = vst.msk [vmem:[#allocation3] sm:$0x1] %vm991, %v990
        $region64: #{tpu_custom_call.1} parent=43 // pred_fallthru
          _
        %v993 = vld [vmem:[%s275] sm:$0xff]
        %v994 = vld [vmem:[%s275 + $0x8] sm:$0xff]
        %v995 = vld [vmem:[%s275 + $0x10] sm:$0xff]
        %v996 = vld [vmem:[%s275 + $0x18] sm:$0xff]
        %v997 = vld [vmem:[%s275 + $0x20] sm:$0xff]
        %v998 = vld [vmem:[%s275 + $0x28] sm:$0xff]
        %v999 = vld [vmem:[%s275 + $0x30] sm:$0xff]
        %v1000 = vld [vmem:[%s275 + $0x38] sm:$0xff]
        %v1001 = vld [vmem:[%s284] sm:$0xff]
        %v1002 = vld [vmem:[%s284 + $0x8] sm:$0xff]
        %v1003 = vld [vmem:[%s284 + $0x10] sm:$0xff]
        %v1004 = vld [vmem:[%s284 + $0x18] sm:$0xff]
        %v1005 = vld [vmem:[%s284 + $0x20] sm:$0xff]
        %v1006 = vld [vmem:[%s284 + $0x28] sm:$0xff]
        %v1007 = vld [vmem:[%s284 + $0x30] sm:$0xff]
        %v1008 = vld [vmem:[%s284 + $0x38] sm:$0xff]
        %v1010 = vlaneseq
        %v1011 = vshrl.u32 %v1010, 7
        %v1012 = vsub.s32 0, %v1011
        %v1013 = vrot.slane %v357, %v1012
        %1015 = vmatprep.subr.mxu0 %v326
        %1016 = vmatpush1.xpose.msra.mxu0 %v325
        %1017 = vmatprep.subr.mxu0 %v334
        %1018 = vmatpush1.xpose.msra.mxu0 %v333
        %1019 = vmatprep.subr.mxu0 %v342
        %1020 = vmatpush1.xpose.msra.mxu0 %v341
        %1021 = vmatprep.subr.mxu0 %v350
        %1022 = vmatpush1.xpose.msra.mxu0 %v349
        %1023 = vmatprep.subr.mxu0 0.0
        %1024 = vmatpush1.xpose.msra.mxu0 0.0
        %1025 = vmatprep.subr.mxu0 0.0
        %1026 = vmatpush1.xpose.msra.mxu0 0.0
        %1027 = vmatprep.subr.mxu0 0.0
        %1028 = vmatpush1.xpose.msra.mxu0 0.0
        %1029 = vmatprep.subr.mxu0 0.0
        %1030 = vmatpush1.xpose.msra.mxu0 0.0
        %1031 = vmatprep.subr.mxu0 0.0
        %1032 = vmatpush1.xpose.msra.mxu0 0.0
        %1033 = vmatprep.subr.mxu0 0.0
        %1034 = vmatpush1.xpose.msra.mxu0 0.0
        %1035 = vmatprep.subr.mxu0 0.0
        %1036 = vmatpush1.xpose.msra.mxu0 0.0
        %1037 = vmatprep.subr.mxu0 0.0
        %1038 = vmatpush1.xpose.msra.mxu0 0.0
        %1039 = vmatprep.subr.mxu0 0.0
        %1040 = vmatpush1.xpose.msra.mxu0 0.0
        %1041 = vmatprep.subr.mxu0 0.0
        %1042 = vmatpush1.xpose.msra.mxu0 0.0
        %1043 = vmatprep.subr.mxu0 0.0
        %1044 = vmatpush1.xpose.msra.mxu0 0.0
        %1045 = vmatprep.subr.mxu0 0.0
        %1046 = vmatpush1.xpose.msra.mxu0 0.0
        %1047 = vmatprep.subr.mxu0 0.0
        %1048 = vmatpush1.xpose.msra.mxu0 0.0
        %1049 = vmatprep.subr.mxu0 0.0
        %1050 = vmatpush1.xpose.msra.mxu0 0.0
        %1051 = vmatprep.subr.mxu0 0.0
        %1052 = vmatpush1.xpose.msra.mxu0 0.0
        %1053 = vmatprep.subr.mxu0 0.0
        %1054 = vmatpush1.xpose.msra.mxu0 0.0
        %1055 = vmatprep.subr.mxu0 0.0
        %1056 = vmatpush1.xpose.msra.mxu0 0.0
        %1057 = vmatprep.subr.mxu0 0.0
        %1058 = vmatpush1.xpose.msra.mxu0 0.0
        %1059 = vmatprep.subr.mxu0 0.0
        %1060 = vmatpush1.xpose.msra.mxu0 0.0
        %1061 = vmatprep.subr.mxu0 0.0
        %1062 = vmatpush1.xpose.msra.mxu0 0.0
        %1063 = vmatprep.subr.mxu0 0.0
        %1064 = vmatpush1.xpose.msra.mxu0 0.0
        %1065 = vmatprep.subr.mxu0 0.0
        %1066 = vmatpush1.xpose.msra.mxu0 0.0
        %1067 = vmatprep.subr.mxu0 0.0
        %1068 = vmatpush1.xpose.msra.mxu0 0.0
        %1069 = vmatprep.subr.mxu0 0.0
        %1070 = vmatpush1.xpose.msra.mxu0 0.0
        %1071 = vmatprep.subr.mxu0 0.0
        %1072 = vmatpush1.xpose.msra.mxu0 0.0
        %1073 = vmatprep.subr.mxu0 0.0
        %1074 = vmatpush1.xpose.msra.mxu0 0.0
        %1075 = vmatprep.subr.mxu0 0.0
        %1076 = vmatpush1.xpose.msra.mxu0 0.0
        %1077 = vmatprep.subr.mxu0 0.0
        %1078 = vmatpush1.xpose.msra.mxu0 0.0
        %1079 = vmatprep.mubr.f32.mxu0 %v994
        %1080 = vmatmul.mubr.f32.gmra.mrb[0].mxu0 %v993
        %v1081 = vpop.f32.mrb[0].mxu0
        %v1082 = vadd.f32 %v1013, %v1081
        %v1083 = vpop.f32.mrb[0].mxu0
        %1084 = vdwg.mxu0
        %1085 = vmatprep.subr.mxu0 %v328
        %1086 = vmatpush1.xpose.msra.mxu0 %v327
        %1087 = vmatprep.subr.mxu0 %v336
        %1088 = vmatpush1.xpose.msra.mxu0 %v335
        %1089 = vmatprep.subr.mxu0 %v344
        %1090 = vmatpush1.xpose.msra.mxu0 %v343
        %1091 = vmatprep.subr.mxu0 %v352
        %1092 = vmatpush1.xpose.msra.mxu0 %v351
        %1093 = vmatprep.subr.mxu0 0.0
        %1094 = vmatpush1.xpose.msra.mxu0 0.0
        %1095 = vmatprep.subr.mxu0 0.0
        %1096 = vmatpush1.xpose.msra.mxu0 0.0
        %1097 = vmatprep.subr.mxu0 0.0
        %1098 = vmatpush1.xpose.msra.mxu0 0.0
        %1099 = vmatprep.subr.mxu0 0.0
        %1100 = vmatpush1.xpose.msra.mxu0 0.0
        %1101 = vmatprep.subr.mxu0 0.0
        %1102 = vmatpush1.xpose.msra.mxu0 0.0
        %1103 = vmatprep.subr.mxu0 0.0
        %1104 = vmatpush1.xpose.msra.mxu0 0.0
        %1105 = vmatprep.subr.mxu0 0.0
        %1106 = vmatpush1.xpose.msra.mxu0 0.0
        %1107 = vmatprep.subr.mxu0 0.0
        %1108 = vmatpush1.xpose.msra.mxu0 0.0
        %1109 = vmatprep.subr.mxu0 0.0
        %1110 = vmatpush1.xpose.msra.mxu0 0.0
        %1111 = vmatprep.subr.mxu0 0.0
        %1112 = vmatpush1.xpose.msra.mxu0 0.0
        %1113 = vmatprep.subr.mxu0 0.0
        %1114 = vmatpush1.xpose.msra.mxu0 0.0
        %1115 = vmatprep.subr.mxu0 0.0
        %1116 = vmatpush1.xpose.msra.mxu0 0.0
        %1117 = vmatprep.subr.mxu0 0.0
        %1118 = vmatpush1.xpose.msra.mxu0 0.0
        %1119 = vmatprep.subr.mxu0 0.0
        %1120 = vmatpush1.xpose.msra.mxu0 0.0
        %1121 = vmatprep.subr.mxu0 0.0
        %1122 = vmatpush1.xpose.msra.mxu0 0.0
        %1123 = vmatprep.subr.mxu0 0.0
        %1124 = vmatpush1.xpose.msra.mxu0 0.0
        %1125 = vmatprep.subr.mxu0 0.0
        %1126 = vmatpush1.xpose.msra.mxu0 0.0
        %1127 = vmatprep.subr.mxu0 0.0
        %1128 = vmatpush1.xpose.msra.mxu0 0.0
        %1129 = vmatprep.subr.mxu0 0.0
        %1130 = vmatpush1.xpose.msra.mxu0 0.0
        %1131 = vmatprep.subr.mxu0 0.0
        %1132 = vmatpush1.xpose.msra.mxu0 0.0
        %1133 = vmatprep.subr.mxu0 0.0
        %1134 = vmatpush1.xpose.msra.mxu0 0.0
        %1135 = vmatprep.subr.mxu0 0.0
        %1136 = vmatpush1.xpose.msra.mxu0 0.0
        %1137 = vmatprep.subr.mxu0 0.0
        %1138 = vmatpush1.xpose.msra.mxu0 0.0
        %1139 = vmatprep.subr.mxu0 0.0
        %1140 = vmatpush1.xpose.msra.mxu0 0.0
        %1141 = vmatprep.subr.mxu0 0.0
        %1142 = vmatpush1.xpose.msra.mxu0 0.0
        %1143 = vmatprep.subr.mxu0 0.0
        %1144 = vmatpush1.xpose.msra.mxu0 0.0
        %1145 = vmatprep.subr.mxu0 0.0
        %1146 = vmatpush1.xpose.msra.mxu0 0.0
        %1147 = vmatprep.subr.mxu0 0.0
        %1148 = vmatpush1.xpose.msra.mxu0 0.0
        %1149 = vmatprep.mubr.f32.mxu0 %v996
        %1150 = vmatmul.mubr.f32.gmra.mrb[0].mxu0 %v995
        %v1151 = vpop.f32.mrb[0].mxu0
        %v1152 = vadd.f32 %v1082, %v1151
        %v1153 = vpop.f32.mrb[0].mxu0
        %1154 = vdwg.mxu0
        %1155 = vmatprep.subr.mxu0 %v330
        %1156 = vmatpush1.xpose.msra.mxu0 %v329
        %1157 = vmatprep.subr.mxu0 %v338
        %1158 = vmatpush1.xpose.msra.mxu0 %v337
        %1159 = vmatprep.subr.mxu0 %v346
        %1160 = vmatpush1.xpose.msra.mxu0 %v345
        %1161 = vmatprep.subr.mxu0 %v354
        %1162 = vmatpush1.xpose.msra.mxu0 %v353
        %1163 = vmatprep.subr.mxu0 0.0
        %1164 = vmatpush1.xpose.msra.mxu0 0.0
        %1165 = vmatprep.subr.mxu0 0.0
        %1166 = vmatpush1.xpose.msra.mxu0 0.0
        %1167 = vmatprep.subr.mxu0 0.0
        %1168 = vmatpush1.xpose.msra.mxu0 0.0
        %1169 = vmatprep.subr.mxu0 0.0
        %1170 = vmatpush1.xpose.msra.mxu0 0.0
        %1171 = vmatprep.subr.mxu0 0.0
        %1172 = vmatpush1.xpose.msra.mxu0 0.0
        %1173 = vmatprep.subr.mxu0 0.0
        %1174 = vmatpush1.xpose.msra.mxu0 0.0
        %1175 = vmatprep.subr.mxu0 0.0
        %1176 = vmatpush1.xpose.msra.mxu0 0.0
        %1177 = vmatprep.subr.mxu0 0.0
        %1178 = vmatpush1.xpose.msra.mxu0 0.0
        %1179 = vmatprep.subr.mxu0 0.0
        %1180 = vmatpush1.xpose.msra.mxu0 0.0
        %1181 = vmatprep.subr.mxu0 0.0
        %1182 = vmatpush1.xpose.msra.mxu0 0.0
        %1183 = vmatprep.subr.mxu0 0.0
        %1184 = vmatpush1.xpose.msra.mxu0 0.0
        %1185 = vmatprep.subr.mxu0 0.0
        %1186 = vmatpush1.xpose.msra.mxu0 0.0
        %1187 = vmatprep.subr.mxu0 0.0
        %1188 = vmatpush1.xpose.msra.mxu0 0.0
        %1189 = vmatprep.subr.mxu0 0.0
        %1190 = vmatpush1.xpose.msra.mxu0 0.0
        %1191 = vmatprep.subr.mxu0 0.0
        %1192 = vmatpush1.xpose.msra.mxu0 0.0
        %1193 = vmatprep.subr.mxu0 0.0
        %1194 = vmatpush1.xpose.msra.mxu0 0.0
        %1195 = vmatprep.subr.mxu0 0.0
        %1196 = vmatpush1.xpose.msra.mxu0 0.0
        %1197 = vmatprep.subr.mxu0 0.0
        %1198 = vmatpush1.xpose.msra.mxu0 0.0
        %1199 = vmatprep.subr.mxu0 0.0
        %1200 = vmatpush1.xpose.msra.mxu0 0.0
        %1201 = vmatprep.subr.mxu0 0.0
        %1202 = vmatpush1.xpose.msra.mxu0 0.0
        %1203 = vmatprep.subr.mxu0 0.0
        %1204 = vmatpush1.xpose.msra.mxu0 0.0
        %1205 = vmatprep.subr.mxu0 0.0
        %1206 = vmatpush1.xpose.msra.mxu0 0.0
        %1207 = vmatprep.subr.mxu0 0.0
        %1208 = vmatpush1.xpose.msra.mxu0 0.0
        %1209 = vmatprep.subr.mxu0 0.0
        %1210 = vmatpush1.xpose.msra.mxu0 0.0
        %1211 = vmatprep.subr.mxu0 0.0
        %1212 = vmatpush1.xpose.msra.mxu0 0.0
        %1213 = vmatprep.subr.mxu0 0.0
        %1214 = vmatpush1.xpose.msra.mxu0 0.0
        %1215 = vmatprep.subr.mxu0 0.0
        %1216 = vmatpush1.xpose.msra.mxu0 0.0
        %1217 = vmatprep.subr.mxu0 0.0
        %1218 = vmatpush1.xpose.msra.mxu0 0.0
        %1219 = vmatprep.mubr.f32.mxu0 %v998
        %1220 = vmatmul.mubr.f32.gmra.mrb[0].mxu0 %v997
        %v1221 = vpop.f32.mrb[0].mxu0
        %v1222 = vadd.f32 %v1152, %v1221
        %v1223 = vpop.f32.mrb[0].mxu0
        %1224 = vdwg.mxu0
        %1225 = vmatprep.subr.mxu0 %v332
        %1226 = vmatpush1.xpose.msra.mxu0 %v331
        %1227 = vmatprep.subr.mxu0 %v340
        %1228 = vmatpush1.xpose.msra.mxu0 %v339
        %1229 = vmatprep.subr.mxu0 %v348
        %1230 = vmatpush1.xpose.msra.mxu0 %v347
        %1231 = vmatprep.subr.mxu0 %v356
        %1232 = vmatpush1.xpose.msra.mxu0 %v355
        %1233 = vmatprep.subr.mxu0 0.0
        %1234 = vmatpush1.xpose.msra.mxu0 0.0
        %1235 = vmatprep.subr.mxu0 0.0
        %1236 = vmatpush1.xpose.msra.mxu0 0.0
        %1237 = vmatprep.subr.mxu0 0.0
        %1238 = vmatpush1.xpose.msra.mxu0 0.0
        %1239 = vmatprep.subr.mxu0 0.0
        %1240 = vmatpush1.xpose.msra.mxu0 0.0
        %1241 = vmatprep.subr.mxu0 0.0
        %1242 = vmatpush1.xpose.msra.mxu0 0.0
        %1243 = vmatprep.subr.mxu0 0.0
        %1244 = vmatpush1.xpose.msra.mxu0 0.0
        %1245 = vmatprep.subr.mxu0 0.0
        %1246 = vmatpush1.xpose.msra.mxu0 0.0
        %1247 = vmatprep.subr.mxu0 0.0
        %1248 = vmatpush1.xpose.msra.mxu0 0.0
        %1249 = vmatprep.subr.mxu0 0.0
        %1250 = vmatpush1.xpose.msra.mxu0 0.0
        %1251 = vmatprep.subr.mxu0 0.0
        %1252 = vmatpush1.xpose.msra.mxu0 0.0
        %1253 = vmatprep.subr.mxu0 0.0
        %1254 = vmatpush1.xpose.msra.mxu0 0.0
        %1255 = vmatprep.subr.mxu0 0.0
        %1256 = vmatpush1.xpose.msra.mxu0 0.0
        %1257 = vmatprep.subr.mxu0 0.0
        %1258 = vmatpush1.xpose.msra.mxu0 0.0
        %1259 = vmatprep.subr.mxu0 0.0
        %1260 = vmatpush1.xpose.msra.mxu0 0.0
        %1261 = vmatprep.subr.mxu0 0.0
        %1262 = vmatpush1.xpose.msra.mxu0 0.0
        %1263 = vmatprep.subr.mxu0 0.0
        %1264 = vmatpush1.xpose.msra.mxu0 0.0
        %1265 = vmatprep.subr.mxu0 0.0
        %1266 = vmatpush1.xpose.msra.mxu0 0.0
        %1267 = vmatprep.subr.mxu0 0.0
        %1268 = vmatpush1.xpose.msra.mxu0 0.0
        %1269 = vmatprep.subr.mxu0 0.0
        %1270 = vmatpush1.xpose.msra.mxu0 0.0
        %1271 = vmatprep.subr.mxu0 0.0
        %1272 = vmatpush1.xpose.msra.mxu0 0.0
        %1273 = vmatprep.subr.mxu0 0.0
        %1274 = vmatpush1.xpose.msra.mxu0 0.0
        %1275 = vmatprep.subr.mxu0 0.0
        %1276 = vmatpush1.xpose.msra.mxu0 0.0
        %1277 = vmatprep.subr.mxu0 0.0
        %1278 = vmatpush1.xpose.msra.mxu0 0.0
        %1279 = vmatprep.subr.mxu0 0.0
        %1280 = vmatpush1.xpose.msra.mxu0 0.0
        %1281 = vmatprep.subr.mxu0 0.0
        %1282 = vmatpush1.xpose.msra.mxu0 0.0
        %1283 = vmatprep.subr.mxu0 0.0
        %1284 = vmatpush1.xpose.msra.mxu0 0.0
        %1285 = vmatprep.subr.mxu0 0.0
        %1286 = vmatpush1.xpose.msra.mxu0 0.0
        %1287 = vmatprep.subr.mxu0 0.0
        %1288 = vmatpush1.xpose.msra.mxu0 0.0
        %1289 = vmatprep.mubr.f32.mxu0 %v1000
        %1290 = vmatmul.mubr.f32.gmra.mrb[0].mxu0 %v999
        %v1291 = vpop.f32.mrb[0].mxu0
        %v1292 = vadd.f32 %v1222, %v1291
        %v1293 = vpop.f32.mrb[0].mxu0
        %1294 = vdwg.mxu0
        %1295 = vmatprep.subr.mxu0 %v326
        %1296 = vmatpush1.xpose.msra.mxu0 %v325
        %1297 = vmatprep.subr.mxu0 %v334
        %1298 = vmatpush1.xpose.msra.mxu0 %v333
        %1299 = vmatprep.subr.mxu0 %v342
        %1300 = vmatpush1.xpose.msra.mxu0 %v341
        %1301 = vmatprep.subr.mxu0 %v350
        %1302 = vmatpush1.xpose.msra.mxu0 %v349
        %1303 = vmatprep.subr.mxu0 0.0
        %1304 = vmatpush1.xpose.msra.mxu0 0.0
        %1305 = vmatprep.subr.mxu0 0.0
        %1306 = vmatpush1.xpose.msra.mxu0 0.0
        %1307 = vmatprep.subr.mxu0 0.0
        %1308 = vmatpush1.xpose.msra.mxu0 0.0
        %1309 = vmatprep.subr.mxu0 0.0
        %1310 = vmatpush1.xpose.msra.mxu0 0.0
        %1311 = vmatprep.subr.mxu0 0.0
        %1312 = vmatpush1.xpose.msra.mxu0 0.0
        %1313 = vmatprep.subr.mxu0 0.0
        %1314 = vmatpush1.xpose.msra.mxu0 0.0
        %1315 = vmatprep.subr.mxu0 0.0
        %1316 = vmatpush1.xpose.msra.mxu0 0.0
        %1317 = vmatprep.subr.mxu0 0.0
        %1318 = vmatpush1.xpose.msra.mxu0 0.0
        %1319 = vmatprep.subr.mxu0 0.0
        %1320 = vmatpush1.xpose.msra.mxu0 0.0
        %1321 = vmatprep.subr.mxu0 0.0
        %1322 = vmatpush1.xpose.msra.mxu0 0.0
        %1323 = vmatprep.subr.mxu0 0.0
        %1324 = vmatpush1.xpose.msra.mxu0 0.0
        %1325 = vmatprep.subr.mxu0 0.0
        %1326 = vmatpush1.xpose.msra.mxu0 0.0
        %1327 = vmatprep.subr.mxu0 0.0
        %1328 = vmatpush1.xpose.msra.mxu0 0.0
        %1329 = vmatprep.subr.mxu0 0.0
        %1330 = vmatpush1.xpose.msra.mxu0 0.0
        %1331 = vmatprep.subr.mxu0 0.0
        %1332 = vmatpush1.xpose.msra.mxu0 0.0
        %1333 = vmatprep.subr.mxu0 0.0
        %1334 = vmatpush1.xpose.msra.mxu0 0.0
        %1335 = vmatprep.subr.mxu0 0.0
        %1336 = vmatpush1.xpose.msra.mxu0 0.0
        %1337 = vmatprep.subr.mxu0 0.0
        %1338 = vmatpush1.xpose.msra.mxu0 0.0
        %1339 = vmatprep.subr.mxu0 0.0
        %1340 = vmatpush1.xpose.msra.mxu0 0.0
        %1341 = vmatprep.subr.mxu0 0.0
        %1342 = vmatpush1.xpose.msra.mxu0 0.0
        %1343 = vmatprep.subr.mxu0 0.0
        %1344 = vmatpush1.xpose.msra.mxu0 0.0
        %1345 = vmatprep.subr.mxu0 0.0
        %1346 = vmatpush1.xpose.msra.mxu0 0.0
        %1347 = vmatprep.subr.mxu0 0.0
        %1348 = vmatpush1.xpose.msra.mxu0 0.0
        %1349 = vmatprep.subr.mxu0 0.0
        %1350 = vmatpush1.xpose.msra.mxu0 0.0
        %1351 = vmatprep.subr.mxu0 0.0
        %1352 = vmatpush1.xpose.msra.mxu0 0.0
        %1353 = vmatprep.subr.mxu0 0.0
        %1354 = vmatpush1.xpose.msra.mxu0 0.0
        %1355 = vmatprep.subr.mxu0 0.0
        %1356 = vmatpush1.xpose.msra.mxu0 0.0
        %1357 = vmatprep.subr.mxu0 0.0
        %1358 = vmatpush1.xpose.msra.mxu0 0.0
        %1359 = vmatprep.mubr.f32.mxu0 %v1002
        %1360 = vmatmul.mubr.f32.gmra.mrb[0].mxu0 %v1001
        %v1361 = vpop.f32.mrb[0].mxu0
        %v1362 = vadd.f32 %v1013, %v1361
        %v1363 = vpop.f32.mrb[0].mxu0
        %1364 = vdwg.mxu0
        %1365 = vmatprep.subr.mxu0 %v328
        %1366 = vmatpush1.xpose.msra.mxu0 %v327
        %1367 = vmatprep.subr.mxu0 %v336
        %1368 = vmatpush1.xpose.msra.mxu0 %v335
        %1369 = vmatprep.subr.mxu0 %v344
        %1370 = vmatpush1.xpose.msra.mxu0 %v343
        %1371 = vmatprep.subr.mxu0 %v352
        %1372 = vmatpush1.xpose.msra.mxu0 %v351
        %1373 = vmatprep.subr.mxu0 0.0
        %1374 = vmatpush1.xpose.msra.mxu0 0.0
        %1375 = vmatprep.subr.mxu0 0.0
        %1376 = vmatpush1.xpose.msra.mxu0 0.0
        %1377 = vmatprep.subr.mxu0 0.0
        %1378 = vmatpush1.xpose.msra.mxu0 0.0
        %1379 = vmatprep.subr.mxu0 0.0
        %1380 = vmatpush1.xpose.msra.mxu0 0.0
        %1381 = vmatprep.subr.mxu0 0.0
        %1382 = vmatpush1.xpose.msra.mxu0 0.0
        %1383 = vmatprep.subr.mxu0 0.0
        %1384 = vmatpush1.xpose.msra.mxu0 0.0
        %1385 = vmatprep.subr.mxu0 0.0
        %1386 = vmatpush1.xpose.msra.mxu0 0.0
        %1387 = vmatprep.subr.mxu0 0.0
        %1388 = vmatpush1.xpose.msra.mxu0 0.0
        %1389 = vmatprep.subr.mxu0 0.0
        %1390 = vmatpush1.xpose.msra.mxu0 0.0
        %1391 = vmatprep.subr.mxu0 0.0
        %1392 = vmatpush1.xpose.msra.mxu0 0.0
        %1393 = vmatprep.subr.mxu0 0.0
        %1394 = vmatpush1.xpose.msra.mxu0 0.0
        %1395 = vmatprep.subr.mxu0 0.0
        %1396 = vmatpush1.xpose.msra.mxu0 0.0
        %1397 = vmatprep.subr.mxu0 0.0
        %1398 = vmatpush1.xpose.msra.mxu0 0.0
        %1399 = vmatprep.subr.mxu0 0.0
        %1400 = vmatpush1.xpose.msra.mxu0 0.0
        %1401 = vmatprep.subr.mxu0 0.0
        %1402 = vmatpush1.xpose.msra.mxu0 0.0
        %1403 = vmatprep.subr.mxu0 0.0
        %1404 = vmatpush1.xpose.msra.mxu0 0.0
        %1405 = vmatprep.subr.mxu0 0.0
        %1406 = vmatpush1.xpose.msra.mxu0 0.0
        %1407 = vmatprep.subr.mxu0 0.0
        %1408 = vmatpush1.xpose.msra.mxu0 0.0
        %1409 = vmatprep.subr.mxu0 0.0
        %1410 = vmatpush1.xpose.msra.mxu0 0.0
        %1411 = vmatprep.subr.mxu0 0.0
        %1412 = vmatpush1.xpose.msra.mxu0 0.0
        %1413 = vmatprep.subr.mxu0 0.0
        %1414 = vmatpush1.xpose.msra.mxu0 0.0
        %1415 = vmatprep.subr.mxu0 0.0
        %1416 = vmatpush1.xpose.msra.mxu0 0.0
        %1417 = vmatprep.subr.mxu0 0.0
        %1418 = vmatpush1.xpose.msra.mxu0 0.0
        %1419 = vmatprep.subr.mxu0 0.0
        %1420 = vmatpush1.xpose.msra.mxu0 0.0
        %1421 = vmatprep.subr.mxu0 0.0
        %1422 = vmatpush1.xpose.msra.mxu0 0.0
        %1423 = vmatprep.subr.mxu0 0.0
        %1424 = vmatpush1.xpose.msra.mxu0 0.0
        %1425 = vmatprep.subr.mxu0 0.0
        %1426 = vmatpush1.xpose.msra.mxu0 0.0
        %1427 = vmatprep.subr.mxu0 0.0
        %1428 = vmatpush1.xpose.msra.mxu0 0.0
        %1429 = vmatprep.mubr.f32.mxu0 %v1004
        %1430 = vmatmul.mubr.f32.gmra.mrb[0].mxu0 %v1003
        %v1431 = vpop.f32.mrb[0].mxu0
        %v1432 = vadd.f32 %v1362, %v1431
        %v1433 = vpop.f32.mrb[0].mxu0
        %1434 = vdwg.mxu0
        %1435 = vmatprep.subr.mxu0 %v330
        %1436 = vmatpush1.xpose.msra.mxu0 %v329
        %1437 = vmatprep.subr.mxu0 %v338
        %1438 = vmatpush1.xpose.msra.mxu0 %v337
        %1439 = vmatprep.subr.mxu0 %v346
        %1440 = vmatpush1.xpose.msra.mxu0 %v345
        %1441 = vmatprep.subr.mxu0 %v354
        %1442 = vmatpush1.xpose.msra.mxu0 %v353
        %1443 = vmatprep.subr.mxu0 0.0
        %1444 = vmatpush1.xpose.msra.mxu0 0.0
        %1445 = vmatprep.subr.mxu0 0.0
        %1446 = vmatpush1.xpose.msra.mxu0 0.0
        %1447 = vmatprep.subr.mxu0 0.0
        %1448 = vmatpush1.xpose.msra.mxu0 0.0
        %1449 = vmatprep.subr.mxu0 0.0
        %1450 = vmatpush1.xpose.msra.mxu0 0.0
        %1451 = vmatprep.subr.mxu0 0.0
        %1452 = vmatpush1.xpose.msra.mxu0 0.0
        %1453 = vmatprep.subr.mxu0 0.0
        %1454 = vmatpush1.xpose.msra.mxu0 0.0
        %1455 = vmatprep.subr.mxu0 0.0
        %1456 = vmatpush1.xpose.msra.mxu0 0.0
        %1457 = vmatprep.subr.mxu0 0.0
        %1458 = vmatpush1.xpose.msra.mxu0 0.0
        %1459 = vmatprep.subr.mxu0 0.0
        %1460 = vmatpush1.xpose.msra.mxu0 0.0
        %1461 = vmatprep.subr.mxu0 0.0
        %1462 = vmatpush1.xpose.msra.mxu0 0.0
        %1463 = vmatprep.subr.mxu0 0.0
        %1464 = vmatpush1.xpose.msra.mxu0 0.0
        %1465 = vmatprep.subr.mxu0 0.0
        %1466 = vmatpush1.xpose.msra.mxu0 0.0
        %1467 = vmatprep.subr.mxu0 0.0
        %1468 = vmatpush1.xpose.msra.mxu0 0.0
        %1469 = vmatprep.subr.mxu0 0.0
        %1470 = vmatpush1.xpose.msra.mxu0 0.0
        %1471 = vmatprep.subr.mxu0 0.0
        %1472 = vmatpush1.xpose.msra.mxu0 0.0
        %1473 = vmatprep.subr.mxu0 0.0
        %1474 = vmatpush1.xpose.msra.mxu0 0.0
        %1475 = vmatprep.subr.mxu0 0.0
        %1476 = vmatpush1.xpose.msra.mxu0 0.0
        %1477 = vmatprep.subr.mxu0 0.0
        %1478 = vmatpush1.xpose.msra.mxu0 0.0
        %1479 = vmatprep.subr.mxu0 0.0
        %1480 = vmatpush1.xpose.msra.mxu0 0.0
        %1481 = vmatprep.subr.mxu0 0.0
        %1482 = vmatpush1.xpose.msra.mxu0 0.0
        %1483 = vmatprep.subr.mxu0 0.0
        %1484 = vmatpush1.xpose.msra.mxu0 0.0
        %1485 = vmatprep.subr.mxu0 0.0
        %1486 = vmatpush1.xpose.msra.mxu0 0.0
        %1487 = vmatprep.subr.mxu0 0.0
        %1488 = vmatpush1.xpose.msra.mxu0 0.0
        %1489 = vmatprep.subr.mxu0 0.0
        %1490 = vmatpush1.xpose.msra.mxu0 0.0
        %1491 = vmatprep.subr.mxu0 0.0
        %1492 = vmatpush1.xpose.msra.mxu0 0.0
        %1493 = vmatprep.subr.mxu0 0.0
        %1494 = vmatpush1.xpose.msra.mxu0 0.0
        %1495 = vmatprep.subr.mxu0 0.0
        %1496 = vmatpush1.xpose.msra.mxu0 0.0
        %1497 = vmatprep.subr.mxu0 0.0
        %1498 = vmatpush1.xpose.msra.mxu0 0.0
        %1499 = vmatprep.mubr.f32.mxu0 %v1006
        %1500 = vmatmul.mubr.f32.gmra.mrb[0].mxu0 %v1005
        %v1501 = vpop.f32.mrb[0].mxu0
        %v1502 = vadd.f32 %v1432, %v1501
        %v1503 = vpop.f32.mrb[0].mxu0
        %1504 = vdwg.mxu0
        %1505 = vmatprep.subr.mxu0 %v332
        %1506 = vmatpush1.xpose.msra.mxu0 %v331
        %1507 = vmatprep.subr.mxu0 %v340
        %1508 = vmatpush1.xpose.msra.mxu0 %v339
        %1509 = vmatprep.subr.mxu0 %v348
        %1510 = vmatpush1.xpose.msra.mxu0 %v347
        %1511 = vmatprep.subr.mxu0 %v356
        %1512 = vmatpush1.xpose.msra.mxu0 %v355
        %1513 = vmatprep.subr.mxu0 0.0
        %1514 = vmatpush1.xpose.msra.mxu0 0.0
        %1515 = vmatprep.subr.mxu0 0.0
        %1516 = vmatpush1.xpose.msra.mxu0 0.0
        %1517 = vmatprep.subr.mxu0 0.0
        %1518 = vmatpush1.xpose.msra.mxu0 0.0
        %1519 = vmatprep.subr.mxu0 0.0
        %1520 = vmatpush1.xpose.msra.mxu0 0.0
        %1521 = vmatprep.subr.mxu0 0.0
        %1522 = vmatpush1.xpose.msra.mxu0 0.0
        %1523 = vmatprep.subr.mxu0 0.0
        %1524 = vmatpush1.xpose.msra.mxu0 0.0
        %1525 = vmatprep.subr.mxu0 0.0
        %1526 = vmatpush1.xpose.msra.mxu0 0.0
        %1527 = vmatprep.subr.mxu0 0.0
        %1528 = vmatpush1.xpose.msra.mxu0 0.0
        %1529 = vmatprep.subr.mxu0 0.0
        %1530 = vmatpush1.xpose.msra.mxu0 0.0
        %1531 = vmatprep.subr.mxu0 0.0
        %1532 = vmatpush1.xpose.msra.mxu0 0.0
        %1533 = vmatprep.subr.mxu0 0.0
        %1534 = vmatpush1.xpose.msra.mxu0 0.0
        %1535 = vmatprep.subr.mxu0 0.0
        %1536 = vmatpush1.xpose.msra.mxu0 0.0
        %1537 = vmatprep.subr.mxu0 0.0
        %1538 = vmatpush1.xpose.msra.mxu0 0.0
        %1539 = vmatprep.subr.mxu0 0.0
        %1540 = vmatpush1.xpose.msra.mxu0 0.0
        %1541 = vmatprep.subr.mxu0 0.0
        %1542 = vmatpush1.xpose.msra.mxu0 0.0
        %1543 = vmatprep.subr.mxu0 0.0
        %1544 = vmatpush1.xpose.msra.mxu0 0.0
        %1545 = vmatprep.subr.mxu0 0.0
        %1546 = vmatpush1.xpose.msra.mxu0 0.0
        %1547 = vmatprep.subr.mxu0 0.0
        %1548 = vmatpush1.xpose.msra.mxu0 0.0
        %1549 = vmatprep.subr.mxu0 0.0
        %1550 = vmatpush1.xpose.msra.mxu0 0.0
        %1551 = vmatprep.subr.mxu0 0.0
        %1552 = vmatpush1.xpose.msra.mxu0 0.0
        %1553 = vmatprep.subr.mxu0 0.0
        %1554 = vmatpush1.xpose.msra.mxu0 0.0
        %1555 = vmatprep.subr.mxu0 0.0
        %1556 = vmatpush1.xpose.msra.mxu0 0.0
        %1557 = vmatprep.subr.mxu0 0.0
        %1558 = vmatpush1.xpose.msra.mxu0 0.0
        %1559 = vmatprep.subr.mxu0 0.0
        %1560 = vmatpush1.xpose.msra.mxu0 0.0
        %1561 = vmatprep.subr.mxu0 0.0
        %1562 = vmatpush1.xpose.msra.mxu0 0.0
        %1563 = vmatprep.subr.mxu0 0.0
        %1564 = vmatpush1.xpose.msra.mxu0 0.0
        %1565 = vmatprep.subr.mxu0 0.0
        %1566 = vmatpush1.xpose.msra.mxu0 0.0
        %1567 = vmatprep.subr.mxu0 0.0
        %1568 = vmatpush1.xpose.msra.mxu0 0.0
        %1569 = vmatprep.mubr.f32.mxu0 %v1008
        %1570 = vmatmul.mubr.f32.gmra.mrb[0].mxu0 %v1007
        %v1571 = vpop.f32.mrb[0].mxu0
        %v1572 = vadd.f32 %v1502, %v1571
        %v1573 = vpop.f32.mrb[0].mxu0
        %1574 = vdwg.mxu0
        %v1575 = vtanh.pop %v1292
        %v1576 = vtanh.pop %v1572
        %v1577 = vsub.f32 %v1575, %v1576
        %v1579 = vlaneseq
        %v1580 = vshrl.u32 %v1579, 7
        %v1581 = vsub.s32 0, %v1580
        %v1582 = vrot.slane %v358, %v1581
        %v1584 = vmul.f32 %v1577, %v1582
        %vm1585 = vcmask 261120
        %v1586 = vsel %vm1585, %v1584, 0.0
        %1587 = vadd.xlane.f32.xlu0 %v1586
        %v1588 = vpop.xlane.xlu0 %1587
        %v1589 = vstv %s322
        %v1590 = vmul.f32 %v1589, %v1572
        %s1591 = ssub.f32 1.0, %s322
        %v1592 = vstv %s1591
        %v1593 = vmul.f32 %v1592, %v1292
        %v1594 = vadd.f32 %v1590, %v1593
        %v1595 = vtanh.pop %v1594
        %v1596 = vmul.f32 %v1595, %v1595
        %v1597 = vsub.f32 1.0, %v1596
        %v1598 = vmul.f32 %v1597, %v1582
        %v1599 = vld [vmem:[#allocation2] sm:$0xff]
        %v1600 = vld [vmem:[#allocation2 + $0x8] sm:$0xff]
        %v1601 = vld [vmem:[#allocation2 + $0x10] sm:$0xff]
        %v1602 = vld [vmem:[#allocation2 + $0x18] sm:$0xff]
        %v1603 = vld [vmem:[#allocation3] sm:$0x1]
        %v1605 = vlaneseq
        %v1606 = vshrl.u32 %v1605, 7
        %v1607 = vsub.s32 0, %v1606
        %v1608 = vrot.slane %v1603, %v1607
        %v1611 = vsel %vm1585, %v1598, 0
        %1613 = vmatprep.subr.mxu0 0.0
        %1614 = vmatpush1.msra.mxu0 %v1599
        %1615 = vmatprep.subr.mxu0 0.0
        %1616 = vmatpush1.msra.mxu0 %v1600
        %1617 = vmatprep.subr.mxu0 0.0
        %1618 = vmatpush1.msra.mxu0 %v1601
        %1619 = vmatprep.subr.mxu0 0.0
        %1620 = vmatpush1.msra.mxu0 %v1602
        %1621 = vmatprep.subr.mxu0 0.0
        %1622 = vmatpush1.msra.mxu0 0.0
        %1623 = vmatprep.subr.mxu0 0.0
        %1624 = vmatpush1.msra.mxu0 0.0
        %1625 = vmatprep.subr.mxu0 0.0
        %1626 = vmatpush1.msra.mxu0 0.0
        %1627 = vmatprep.subr.mxu0 0.0
        %1628 = vmatpush1.msra.mxu0 0.0
        %1629 = vmatprep.subr.mxu0 0.0
        %1630 = vmatpush1.msra.mxu0 0.0
        %1631 = vmatprep.subr.mxu0 0.0
        %1632 = vmatpush1.msra.mxu0 0.0
        %1633 = vmatprep.subr.mxu0 0.0
        %1634 = vmatpush1.msra.mxu0 0.0
        %1635 = vmatprep.subr.mxu0 0.0
        %1636 = vmatpush1.msra.mxu0 0.0
        %1637 = vmatprep.subr.mxu0 0.0
        %1638 = vmatpush1.msra.mxu0 0.0
        %1639 = vmatprep.subr.mxu0 0.0
        %1640 = vmatpush1.msra.mxu0 0.0
        %1641 = vmatprep.subr.mxu0 0.0
        %1642 = vmatpush1.msra.mxu0 0.0
        %1643 = vmatprep.subr.mxu0 0.0
        %1644 = vmatpush1.msra.mxu0 0.0
        %1645 = vmatprep.subr.mxu0 0.0
        %1646 = vmatpush1.msra.mxu0 0.0
        %1647 = vmatprep.subr.mxu0 0.0
        %1648 = vmatpush1.msra.mxu0 0.0
        %1649 = vmatprep.subr.mxu0 0.0
        %1650 = vmatpush1.msra.mxu0 0.0
        %1651 = vmatprep.subr.mxu0 0.0
        %1652 = vmatpush1.msra.mxu0 0.0
        %1653 = vmatprep.subr.mxu0 0.0
        %1654 = vmatpush1.msra.mxu0 0.0
        %1655 = vmatprep.subr.mxu0 0.0
        %1656 = vmatpush1.msra.mxu0 0.0
        %1657 = vmatprep.subr.mxu0 0.0
        %1658 = vmatpush1.msra.mxu0 0.0
        %1659 = vmatprep.subr.mxu0 0.0
        %1660 = vmatpush1.msra.mxu0 0.0
        %1661 = vmatprep.subr.mxu0 0.0
        %1662 = vmatpush1.msra.mxu0 0.0
        %1663 = vmatprep.subr.mxu0 0.0
        %1664 = vmatpush1.msra.mxu0 0.0
        %1665 = vmatprep.subr.mxu0 0.0
        %1666 = vmatpush1.msra.mxu0 0.0
        %1667 = vmatprep.subr.mxu0 0.0
        %1668 = vmatpush1.msra.mxu0 0.0
        %1669 = vmatprep.subr.mxu0 0.0
        %1670 = vmatpush1.msra.mxu0 0.0
        %1671 = vmatprep.subr.mxu0 0.0
        %1672 = vmatpush1.msra.mxu0 0.0
        %1673 = vmatprep.subr.mxu0 0.0
        %1674 = vmatpush1.msra.mxu0 0.0
        %1675 = vmatprep.subr.mxu0 0.0
        %1676 = vmatpush1.msra.mxu0 0.0
        %1677 = vmatprep.mubr.f32.mxu0 0.0
        %1678 = vmatmul.mubr.f32.gmra.mrb[0].mxu0 %v1611
        %v1679 = vpop.f32.mrb[0].mxu0
        %v1680 = vadd.f32 %v1608, %v1679
        %v1681 = vpop.f32.mrb[0].mxu0
        %1682 = vdwg.mxu0
        %v1683 = vmul.f32 %v1598, %v1680
        %v1684 = vsel %vm1585, %v1683, 0.0
        %1685 = vadd.xlane.f32.xlu0 %v1684
        %v1686 = vpop.xlane.xlu0 %1685
        %v1687 = vadd.f32 %v1686, 1.024e-09
        %v1688 = vmax.f32 %v1687, 0.0
        %v1689 = vrsqrt.pop %v1688
        %v1690 = vmul.f32 %v1688, %v1689
        %vm1691 = vcmp.eq.f32.partialorder %v1688, inf
        %v1692 = vsel %vm1691, %v1688, %v1690
        %vm1693 = vcmp.eq.f32.partialorder %v1688, 0.0
        %v1694 = vand.u32 %v1688, 2147483648
        %v1695 = vsel %vm1693, %v1694, %v1692
        %v1696 = vsub.f32 %v1695, 1.0
        %v1697 = vld [vmem:[#allocation12] sm:$0x1]
        %v1698 = vmul.f32 %v1696, %v1696
        %v1699 = vstv %s323
        %v1700 = vmul.f32 %v1699, %v1698
        %v1701 = vadd.f32 %v1588, %v1700
        %v1702 = vrot.slane %v1701, 4
        %v1703 = vadd.f32 %v1701, %v1702
        %v1704 = vrot.slane %v1703, 2
        %v1705 = vadd.f32 %v1703, %v1704
        %v1706 = vrot.slane %v1705, 1
        %v1707 = vadd.f32 %v1705, %v1706
        %v1708 = vstv %s324
        %v1709 = vmul.f32 %v1708, %v1707
        %v1710 = vadd.f32 %v1697, %v1709
        %vm1711 = vcmask 0
        %1712 = vst.msk [vmem:[#allocation12] sm:$0x1] %vm1711, %v1710
        // Predicated region
        $region65: #{tpu_custom_call.1} parent=43 // pred_check
          %p1713 = pneg %p174
        $region66: #{tpu_custom_call.1} parent=43 // pred_check_branch
          %1715 = sbr.rel (%p1713) target = $region68
        $region67: #{tpu_custom_call.1} parent=43 // pred_region
          %s1717 = ssub.s32 16, 16
          %1718 = vsyncadd [#allocation6], %s1717
          %s1720 = sshll.u32 [#allocation12], 4
          %s1721 = int_to_ptr.vmem [resolvable:$true] %s1720
          %1723 = dma.vmem_to_hbm [thread:$0]  %s1721, 16, %s6, [#allocation6]
        $region68: #{tpu_custom_call.1} parent=43 // pred_fallthru
          _
        // Predicated region
        $region69: #{tpu_custom_call.1} parent=43 // pred_check
          %p1724 = pneg %p174
        $region70: #{tpu_custom_call.1} parent=43 // pred_check_branch
          %1726 = sbr.rel (%p1724) target = $region72
        $region71: #{tpu_custom_call.1} parent=43 // pred_region
          %1727 = dma.done [#allocation6], 16
        $region72: #{tpu_custom_call.1} parent=43 // pred_fallthru
          _
      $region44: #{tpu_custom_call.1} parent=5 // pred_fallthru
        _
      %p1728 = scmp.le.s32.totalorder 2, %s20
      // Predicated region
      $region73: #{tpu_custom_call.1} parent=5 // pred_check
        %p1729 = pneg %p1728
      $region74: #{tpu_custom_call.1} parent=5 // pred_check_branch
        %1731 = sbr.rel (%p1729) target = $region76
      $region75: #{tpu_custom_call.1} parent=5 // pred_region
        %s1732 = ssub.s32 %s20, 2
      $region76: #{tpu_custom_call.1} parent=5 // pred_fallthru
        _
    $region6: #{tpu_custom_call.1} parent=1 // loop_footer
      %s24 = sadd.s32 1, %s20
    $region7: #{tpu_custom_call.1} parent=1 // loop_footer_branch
      %19 = sbr.rel target = $region3
    $region8: #{tpu_custom_call.1} parent=1 // loop_exit
      _
    %1733 = vsyncpa [#allocation5], 1
    %s1734 = scalar_lea.sflag [#allocation5], 1
    %1735 = vsyncpa %s1734, 1
    %1736 = vsyncpa [#allocation9], 1
    %s1737 = scalar_lea.sflag [#allocation9], 1
    %1738 = vsyncpa %s1737, 1
    %1739 = vsyncpa [#allocation6], 1
    %s1740 = scalar_lea.sflag [#allocation6], 1
    %1741 = vsyncpa %s1740, 1
    %1742 = vsyncpa [#allocation7], 1
    %s1743 = scalar_lea.sflag [#allocation7], 1
    %1744 = vsyncpa %s1743, 1

</llo_original>
